<compile_context>
chip_gen: v7x
topology: tpu7x:2x2x1
jax: 0.10.0
libtpu: 0.0.40
codegen_flags: <defaults>
</compile_context>

<pallas_src>
import functools
import math

import jax
import jax.numpy as jnp
from jax import lax
from jax.experimental import pallas as pl
from jax.experimental.pallas import tpu as pltpu


def _layernorm_f32(x, gamma, beta, eps=1e-5):
    # f32 statistics + elementwise (VPU path); gamma/beta broadcast from (1, E).
    mean = jnp.mean(x, axis=-1, keepdims=True)
    var = jnp.mean((x - mean) ** 2, axis=-1, keepdims=True)
    return (x - mean) * lax.rsqrt(var + eps) * gamma + beta


def _encoder_block_kernel(
    x_ref,      # (1, Sp, E) f32   activations for batch b (resident across head groups)
    wq_ref,     # (G, E, Gw) bf16  grouped Q weights (1/sqrt(hd) pre-folded)
    wk_ref,     # (G, E, Gw) bf16
    wv_ref,     # (G, E, Gw) bf16
    bqkv_ref,   # (G, 3, Gw) f32   grouped q/k/v biases (q pre-scaled)
    wo_ref,     # (G, Gw, E) bf16  grouped rows of the output projection
    w1_ref,     # (E, M)     bf16
    b1_ref,     # (1, M)     f32
    w2_ref,     # (M, E)     bf16
    vec_ref,    # (6, E)     f32   rows = [gamma1, beta1, gamma2, beta2, bo, b2]
    o_ref,      # (1, Sp, E) f32
    xn_ref,     # (Sp, E)    bf16  scratch: LayerNorm1(x), computed once per batch element
    acc_ref,    # (Sp, E)    f32   scratch: x + attention output, accumulated over groups
    pv_ref,     # (Sp, Gw)   bf16  scratch: per-group softmax(QK^T) @ V
    *,
    head_dim, heads_per_group, n_valid, mlp_chunk,
):
    g = pl.program_id(1)
    n_groups = pl.num_programs(1)
    s_pad = x_ref.shape[1]

    gamma1, beta1 = vec_ref[0:1, :], vec_ref[1:2, :]
    gamma2, beta2 = vec_ref[2:3, :], vec_ref[3:4, :]
    bo, b2 = vec_ref[4:5, :], vec_ref[5:6, :]

    # ---- once per batch element: LayerNorm1 (reused by every head group) + accumulator
    #      init with residual and the output-projection bias ----
    @pl.when(g == 0)
    def _():
        x = x_ref[0]
        xn_ref[...] = _layernorm_f32(x, gamma1, beta1).astype(jnp.bfloat16)
        acc_ref[...] = x + bo

    xn = xn_ref[...]                                          # (Sp, E) bf16

    # ---- grouped Q/K/V projections: MXU tile width = heads_per_group * head_dim ----
    bqkv = bqkv_ref[g]                                        # (3, Gw) f32
    q = jnp.dot(xn, wq_ref[g], preferred_element_type=jnp.float32) + bqkv[0:1]
    k = jnp.dot(xn, wk_ref[g], preferred_element_type=jnp.float32) + bqkv[1:2]
    v = jnp.dot(xn, wv_ref[g], preferred_element_type=jnp.float32) + bqkv[2:3]

    # ---- per-head attention inside the group (short static unrolled loop) ----
    # TODO(synk): for long sequences, tile KV flash-style (online softmax) instead of the
    # full Sp x Sp score tile; ViT-scale S keeps the tile comfortably in VMEM.
    for h in range(heads_per_group):
        sl = slice(h * head_dim, (h + 1) * head_dim)
        qh = q[:, sl].astype(jnp.bfloat16)
        kh = k[:, sl].astype(jnp.bfloat16)
        vh = v[:, sl].astype(jnp.bfloat16)
        scores = lax.dot_general(qh, kh, (((1,), (1,)), ((), ())),
                                 preferred_element_type=jnp.float32)     # (Sp, Sp) f32
        if n_valid != s_pad:       # static: only emitted when the sequence was padded
            key_ids = lax.broadcasted_iota(jnp.int32, scores.shape, 1)
            scores = jnp.where(key_ids < n_valid, scores, jnp.float32(-1e30))
        scores = scores - jnp.max(scores, axis=-1, keepdims=True)
        p = jnp.exp(scores)
        # ~1e-3-level relative error from the approximate reciprocal (EUP slot); use
        # approx=False if tighter parity with PyTorch is required.
        p = p * pl.reciprocal(jnp.sum(p, axis=-1, keepdims=True), approx=True)
        pv = jnp.dot(p.astype(jnp.bfloat16), vh, preferred_element_type=jnp.float32)
        pv_ref[:, sl] = pv.astype(jnp.bfloat16)

    # ---- concat fused into the output projection: full-K (Gw) MXU contraction ----
    acc_ref[...] += jnp.dot(pv_ref[...], wo_ref[g], preferred_element_type=jnp.float32)

    # ---- after the last head group: LayerNorm2 + chunked MLP + residual ----
    @pl.when(g == n_groups - 1)
    def _():
        x1 = acc_ref[...]
        x2n = _layernorm_f32(x1, gamma2, beta2).astype(jnp.bfloat16)
        m_total = w1_ref.shape[1]
        y = x1
        for c in range(m_total // mlp_chunk):
            cs = slice(c * mlp_chunk, (c + 1) * mlp_chunk)
            hid = jnp.dot(x2n, w1_ref[:, cs],
                          preferred_element_type=jnp.float32) + b1_ref[:, cs]
            hid16 = jnp.maximum(hid, 0.0).astype(jnp.bfloat16)
            y = y + jnp.dot(hid16, w2_ref[cs, :], preferred_element_type=jnp.float32)
        o_ref[0] = y + b2                                    # lane-dense (Sp, E) store


def _default_mxu_lanes():
    """Target MXU tile width for head grouping: 256 on v6e/v7x, 128 on older chips."""
    try:
        kind = jax.devices()[0].device_kind.lower()
    except Exception:
        return 256
    if any(t in kind for t in ("v5 lite", "v5e", "v5lite", "v5p", "v4", "v3", "v2")):
        return 128
    return 256


def prepare_params(params, num_heads, *, heads_per_group=None):
    """One-time weight prep (reshape / bf16 cast / scale folding).

    Cache the returned dict and reuse it across forward calls so the reshapes/casts never
    run on the per-call path.
    """
    E = params["wqkv"].shape[0]
    M = params["w1"].shape[1]
    assert E % num_heads == 0, "embed_dim must be divisible by num_heads"
    hd = E // num_heads

    if heads_per_group is None:
        heads_per_group = max(1, min(num_heads, _default_mxu_lanes() // max(hd, 1)))
    heads_per_group = max(1, min(heads_per_group, num_heads))
    while num_heads % heads_per_group:
        heads_per_group -= 1
    G = num_heads // heads_per_group
    Gw = heads_per_group * hd

    bf16 = lambda a: a.astype(jnp.bfloat16)
    scale = 1.0 / math.sqrt(hd)

    wqkv = params["wqkv"].astype(jnp.float32)
    bqkv = params["bqkv"].astype(jnp.float32).reshape(3 * E)
    wq_, wk_, wv_ = (wqkv[:, i * E:(i + 1) * E] for i in range(3))
    bq_, bk_, bv_ = (bqkv[i * E:(i + 1) * E] for i in range(3))
    wq_, bq_ = wq_ * scale, bq_ * scale          # fold 1/sqrt(head_dim) into the Q path

    group_w = lambda w: bf16(w.reshape(E, G, Gw).transpose(1, 0, 2))       # (G, E, Gw)
    prepared = {
        "wq": group_w(wq_), "wk": group_w(wk_), "wv": group_w(wv_),
        "bqkv": jnp.stack([b.reshape(G, Gw) for b in (bq_, bk_, bv_)], axis=1),  # (G,3,Gw)
        "wo": bf16(params["wo"].astype(jnp.float32).reshape(G, Gw, E)),
        "w1": bf16(params["w1"]),
        "b1": params["b1"].astype(jnp.float32),
        "w2": bf16(params["w2"]),
        "vec": jnp.concatenate(
            [params["gamma1"], params["beta1"], params["gamma2"], params["beta2"],
             params["bo"], params["b2"]], axis=0).astype(jnp.float32),            # (6, E)
    }

    mlp_chunk = M
    if M > 1024:
        for cand in (1024, 512, 256, 128):
            if M % cand == 0:
                mlp_chunk = cand
                break
    prepared["meta"] = dict(embed_dim=E, mlp_dim=M, num_heads=num_heads, head_dim=hd,
                            heads_per_group=heads_per_group, num_groups=G,
                            group_width=Gw, mlp_chunk=mlp_chunk)
    return prepared


def transformer_encoder_block(x_sbe, prepared):
    """x_sbe: (S, B, E) float32 in the PyTorch nn.MultiheadAttention layout."""
    meta = prepared["meta"]
    S, B, E = x_sbe.shape
    assert E == meta["embed_dim"]
    M, G, Gw = meta["mlp_dim"], meta["num_groups"], meta["group_width"]

    # Single HBM transpose so E stays the lane dim; pad S up to a sublane multiple
    # (key positions >= S are masked inside the kernel).  For best lane/MXU-row
    # utilization at tiny S, pad further to 128 or pack several batch rows per block.
    s_pad = ((S + 7) // 8) * 8
    x_bse = jnp.transpose(x_sbe, (1, 0, 2))
    if s_pad != S:
        x_bse = jnp.pad(x_bse, ((0, 0), (0, s_pad - S), (0, 0)))

    # ---- VMEM budget: blocks + scratch + in-kernel intermediates, capped below the
    #      physical VMEM of the current chip generation ----
    nbytes = lambda shape, dt: math.prod(shape) * jnp.dtype(dt).itemsize
    weight_bytes = (3 * nbytes((G, E, Gw), jnp.bfloat16)
                    + nbytes((G, Gw, E), jnp.bfloat16)
                    + nbytes((G, 3, Gw), jnp.float32)
                    + nbytes((E, M), jnp.bfloat16) + nbytes((M, E), jnp.bfloat16)
                    + nbytes((1, M), jnp.float32) + nbytes((8, E), jnp.float32))
    act_bytes = 2 * 2 * nbytes((1, s_pad, E), jnp.float32)       # x + out, double-buffered
    scratch_bytes = (nbytes((s_pad, E), jnp.bfloat16) + nbytes((s_pad, E), jnp.float32)
                     + nbytes((s_pad, Gw), jnp.bfloat16))
    interm_bytes = (3 * nbytes((s_pad, Gw), jnp.float32)          # q, k, v
                    + 2 * nbytes((s_pad, s_pad), jnp.float32)     # scores / probs
                    + nbytes((s_pad, meta["mlp_chunk"]), jnp.float32)
                    + 2 * nbytes((s_pad, E), jnp.float32))        # x1 / y
    # 2x on weights: constant-index blocks are still double-buffered by default.
    # TODO(synk): on v7x, add pipeline_mode=pl.Buffered(1) to the constant-index weight
    # specs (nothing to prefetch) and stream w1/w2 over an M grid axis for very large M.
    budget = 2 * weight_bytes + act_bytes + scratch_bytes + interm_bytes + (4 << 20)
    try:
        vmem_cap = int(pltpu.get_tpu_info().vmem_capacity_bytes)
    except Exception:
        vmem_cap = 64 << 20                                       # v7x physical floor
    vmem_limit = int(min(max(budget, 16 << 20), vmem_cap - (2 << 20)))

    kernel = functools.partial(
        _encoder_block_kernel,
        head_dim=meta["head_dim"], heads_per_group=meta["heads_per_group"],
        n_valid=S, mlp_chunk=meta["mlp_chunk"])

    const3 = lambda shape: pl.BlockSpec(shape, lambda b, g: (0, 0, 0))
    const2 = lambda shape: pl.BlockSpec(shape, lambda b, g: (0, 0))

    out = pl.pallas_call(
        kernel,
        out_shape=jax.ShapeDtypeStruct((B, s_pad, E), jnp.float32),
        grid_spec=pltpu.PrefetchScalarGridSpec(
            num_scalar_prefetch=0,
            grid=(B, G),                          # head-group (reduction) axis last
            in_specs=[
                pl.BlockSpec((1, s_pad, E), lambda b, g: (b, 0, 0)),          # x
                const3((G, E, Gw)), const3((G, E, Gw)), const3((G, E, Gw)),   # wq, wk, wv
                const3((G, 3, Gw)),                                           # bq/bk/bv
                const3((G, Gw, E)),                                           # wo
                const2((E, M)), const2((1, M)), const2((M, E)),               # w1, b1, w2
                const2((6, E)),                                               # LN/bias pack
            ],
            out_specs=pl.BlockSpec((1, s_pad, E), lambda b, g: (b, 0, 0)),
            scratch_shapes=[
                pltpu.VMEM((s_pad, E), jnp.bfloat16),    # LayerNorm1(x), computed once
                pltpu.VMEM((s_pad, E), jnp.float32),     # residual + attention accumulator
                pltpu.VMEM((s_pad, Gw), jnp.bfloat16),   # per-group attention output
            ],
        ),
        compiler_params=pltpu.CompilerParams(
            # Batch axis parallel (megacore; on v7x keep B >= 2 so both TCs have work),
            # head-group axis is the accumulator/reduction axis.
            dimension_semantics=("parallel", "arbitrary"),
            vmem_limit_bytes=vmem_limit,
        ),
    )(
        x_bse, prepared["wq"], prepared["wk"], prepared["wv"], prepared["bqkv"],
        prepared["wo"], prepared["w1"], prepared["b1"], prepared["w2"], prepared["vec"],
    )
    if s_pad != S:
        out = out[:, :S, :]
    return jnp.transpose(out, (1, 0, 2))              # back to (S, B, E)


def reference_block(x_sbe, params, *, num_heads):
    """Pure-JAX f32 reference mirroring the PyTorch forward."""
    S, B, E = x_sbe.shape
    hd = E // num_heads

    def ln(x, g, b):
        m = jnp.mean(x, -1, keepdims=True)
        v = jnp.mean((x - m) ** 2, -1, keepdims=True)
        return (x - m) / jnp.sqrt(v + 1e-5) * g + b

    x = x_sbe
    xn = ln(x, params["gamma1"][0], params["beta1"][0])
    qkv = xn @ params["wqkv"] + params["bqkv"][0]               # (S, B, 3E)
    q, k, v = jnp.split(qkv, 3, axis=-1)
    q = q.reshape(S, B, num_heads, hd) / math.sqrt(hd)
    k = k.reshape(S, B, num_heads, hd)
    v = v.reshape(S, B, num_heads, hd)
    scores = jnp.einsum("qbhd,kbhd->bhqk", q, k)
    p = jax.nn.softmax(scores, axis=-1)
    attn = jnp.einsum("bhqk,kbhd->qbhd", p, v).reshape(S, B, E)
    attn = attn @ params["wo"] + params["bo"][0]
    x1 = x + attn
    x2n = ln(x1, params["gamma2"][0], params["beta2"][0])
    h = jnp.maximum(x2n @ params["w1"] + params["b1"][0], 0.0)
    y = h @ params["w2"] + params["b2"][0]
    return x1 + y


def init_params(key, embed_dim, mlp_dim):
    ks = jax.random.split(key, 8)
    s = 0.05
    return {
        # stored pre-transposed so the kernel computes x @ W
        "wqkv": s * jax.random.normal(ks[0], (embed_dim, 3 * embed_dim), jnp.float32),
        "bqkv": s * jax.random.normal(ks[1], (1, 3 * embed_dim), jnp.float32),
        "wo":   s * jax.random.normal(ks[2], (embed_dim, embed_dim), jnp.float32),
        "bo":   s * jax.random.normal(ks[3], (1, embed_dim), jnp.float32),
        "w1":   s * jax.random.normal(ks[4], (embed_dim, mlp_dim), jnp.float32),
        "b1":   s * jax.random.normal(ks[5], (1, mlp_dim), jnp.float32),
        "w2":   s * jax.random.normal(ks[6], (mlp_dim, embed_dim), jnp.float32),
        "b2":   s * jax.random.normal(ks[7], (1, embed_dim), jnp.float32),
        "gamma1": jnp.ones((1, embed_dim), jnp.float32),
        "beta1":  jnp.zeros((1, embed_dim), jnp.float32),
        "gamma2": jnp.ones((1, embed_dim), jnp.float32),
        "beta2":  jnp.zeros((1, embed_dim), jnp.float32),
    }


if __name__ == "__main__":
    # Small but lane-aligned shapes (E, M multiples of 128 => unmasked lane-dense stores).
    SEQ, BATCH, EMBED, HEADS, MLP = 16, 2, 128, 4, 256

    key = jax.random.PRNGKey(0)
    kx, kp = jax.random.split(key)
    x = jax.random.normal(kx, (SEQ, BATCH, EMBED), jnp.float32)   # (S, B, E)
    params = init_params(kp, EMBED, MLP)

    prepared = prepare_params(params, num_heads=HEADS)            # one-time weight prep
    out = transformer_encoder_block(x, prepared)
    out = jax.block_until_ready(out)

    ref = reference_block(x, params, num_heads=HEADS)
    assert out.shape == (SEQ, BATCH, EMBED)
    max_err = float(jnp.max(jnp.abs(out - ref)))
    # bf16 MXU inputs with f32 accumulation => loosened tolerance vs the f32 reference.
    assert max_err < 5e-2, f"mismatch vs JAX reference, max abs err {max_err:.3e}"

    print("KERNEL_OK")
</pallas_src>

<mosaic_0001>
module attributes {stable_mosaic.version = 11 : i64} {
  func.func @_encoder_block_kernel(%arg0: i32, %arg1: i32, %arg2: memref<1x16x128xf32, #tpu.memory_space<vmem>>, %arg3: memref<1x128x128xbf16, #tpu.memory_space<vmem>>, %arg4: memref<1x128x128xbf16, #tpu.memory_space<vmem>>, %arg5: memref<1x128x128xbf16, #tpu.memory_space<vmem>>, %arg6: memref<1x3x128xf32, #tpu.memory_space<vmem>>, %arg7: memref<1x128x128xbf16, #tpu.memory_space<vmem>>, %arg8: memref<128x256xbf16, #tpu.memory_space<vmem>>, %arg9: memref<1x256xf32, #tpu.memory_space<vmem>>, %arg10: memref<256x128xbf16, #tpu.memory_space<vmem>>, %arg11: memref<6x128xf32, #tpu.memory_space<vmem>>, %arg12: memref<1x16x128xf32, #tpu.memory_space<vmem>>, %arg13: memref<16x128xbf16, #tpu.memory_space<vmem>>, %arg14: memref<16x128xf32, #tpu.memory_space<vmem>>, %arg15: memref<16x128xbf16, #tpu.memory_space<vmem>>) attributes {dimension_semantics = [#tpu.dimension_semantics<parallel>, #tpu.dimension_semantics<arbitrary>], iteration_bounds = array<i64: 2, 1>, scalar_prefetch = 0 : i64, scratch_operands = 3 : i64, tpu.core_type = #tpu.core_type<tc>, window_params = [{transform_indices = @transform_0, window_bounds = array<i64: 1, 16, 128>}, {pipeline_mode = #tpu.pipeline_mode<synchronous>, transform_indices = @transform_1, window_bounds = array<i64: 1, 128, 128>}, {pipeline_mode = #tpu.pipeline_mode<synchronous>, transform_indices = @transform_2, window_bounds = array<i64: 1, 128, 128>}, {pipeline_mode = #tpu.pipeline_mode<synchronous>, transform_indices = @transform_3, window_bounds = array<i64: 1, 128, 128>}, {pipeline_mode = #tpu.pipeline_mode<synchronous>, transform_indices = @transform_4, window_bounds = array<i64: 1, 3, 128>}, {pipeline_mode = #tpu.pipeline_mode<synchronous>, transform_indices = @transform_5, window_bounds = array<i64: 1, 128, 128>}, {pipeline_mode = #tpu.pipeline_mode<synchronous>, transform_indices = @transform_6, window_bounds = array<i64: 128, 256>}, {pipeline_mode = #tpu.pipeline_mode<synchronous>, transform_indices = @transform_7, window_bounds = array<i64: 1, 256>}, {pipeline_mode = #tpu.pipeline_mode<synchronous>, transform_indices = @transform_8, window_bounds = array<i64: 256, 128>}, {pipeline_mode = #tpu.pipeline_mode<synchronous>, transform_indices = @transform_9, window_bounds = array<i64: 6, 128>}, {transform_indices = @transform_10, window_bounds = array<i64: 1, 16, 128>}]} {
    %c0 = arith.constant 0 : index
    %c0_0 = arith.constant 0 : index
    %0 = vector.load %arg11[%c0, %c0_0] : memref<6x128xf32, #tpu.memory_space<vmem>>, vector<1x128xf32>
    %c1 = arith.constant 1 : index
    %c0_1 = arith.constant 0 : index
    %1 = vector.load %arg11[%c1, %c0_1] : memref<6x128xf32, #tpu.memory_space<vmem>>, vector<1x128xf32>
    %c2 = arith.constant 2 : index
    %c0_2 = arith.constant 0 : index
    %2 = vector.load %arg11[%c2, %c0_2] : memref<6x128xf32, #tpu.memory_space<vmem>>, vector<1x128xf32>
    %c3 = arith.constant 3 : index
    %c0_3 = arith.constant 0 : index
    %3 = vector.load %arg11[%c3, %c0_3] : memref<6x128xf32, #tpu.memory_space<vmem>>, vector<1x128xf32>
    %c4 = arith.constant 4 : index
    %c0_4 = arith.constant 0 : index
    %4 = vector.load %arg11[%c4, %c0_4] : memref<6x128xf32, #tpu.memory_space<vmem>>, vector<1x128xf32>
    %c5 = arith.constant 5 : index
    %c0_5 = arith.constant 0 : index
    %5 = vector.load %arg11[%c5, %c0_5] : memref<6x128xf32, #tpu.memory_space<vmem>>, vector<1x128xf32>
    %c0_i32 = arith.constant 0 : i32
    %6 = arith.cmpi eq, %arg1, %c0_i32 : i32
    %7 = arith.extui %6 : i1 to i32
    %c0_i32_6 = arith.constant 0 : i32
    %8 = arith.cmpi ne, %7, %c0_i32_6 : i32
    scf.if %8 {
      %c0_51 = arith.constant 0 : index
      %c0_52 = arith.constant 0 : index
      %c0_53 = arith.constant 0 : index
      %129 = vector.load %arg2[%c0_51, %c0_52, %c0_53] : memref<1x16x128xf32, #tpu.memory_space<vmem>>, vector<1x16x128xf32>
      %130 = vector.shape_cast %129 : vector<1x16x128xf32> to vector<16x128xf32>
      %cst_54 = arith.constant dense<0.000000e+00> : vector<16xf32>
      %131 = vector.multi_reduction <add>, %130, %cst_54 [1] : vector<16x128xf32> to vector<16xf32>
      %132 = vector.shape_cast %131 : vector<16xf32> to vector<16x1xf32>
      %cst_55 = arith.constant 1.280000e+02 : f32
      %133 = vector.broadcast %cst_55 : f32 to vector<16x1xf32>
      %134 = arith.divf %132, %133 : vector<16x1xf32>
      %135 = vector.broadcast %134 : vector<16x1xf32> to vector<16x128xf32>
      %136 = arith.subf %130, %135 : vector<16x128xf32>
      %137 = arith.mulf %136, %136 : vector<16x128xf32>
      %cst_56 = arith.constant dense<0.000000e+00> : vector<16xf32>
      %138 = vector.multi_reduction <add>, %137, %cst_56 [1] : vector<16x128xf32> to vector<16xf32>
      %139 = vector.shape_cast %138 : vector<16xf32> to vector<16x1xf32>
      %cst_57 = arith.constant 1.280000e+02 : f32
      %140 = vector.broadcast %cst_57 : f32 to vector<16x1xf32>
      %141 = arith.divf %139, %140 : vector<16x1xf32>
      %142 = vector.broadcast %134 : vector<16x1xf32> to vector<16x128xf32>
      %143 = arith.subf %130, %142 : vector<16x128xf32>
      %cst_58 = arith.constant 9.99999974E-6 : f32
      %144 = vector.broadcast %cst_58 : f32 to vector<16x1xf32>
      %145 = arith.addf %141, %144 : vector<16x1xf32>
      %146 = math.rsqrt %145 : vector<16x1xf32>
      %147 = vector.broadcast %146 : vector<16x1xf32> to vector<16x128xf32>
      %148 = arith.mulf %143, %147 : vector<16x128xf32>
      %149 = vector.broadcast %0 : vector<1x128xf32> to vector<16x128xf32>
      %150 = arith.mulf %148, %149 : vector<16x128xf32>
      %151 = vector.broadcast %1 : vector<1x128xf32> to vector<16x128xf32>
      %152 = arith.addf %150, %151 : vector<16x128xf32>
      %153 = arith.truncf %152 : vector<16x128xf32> to vector<16x128xbf16>
      %c0_59 = arith.constant 0 : index
      %c0_60 = arith.constant 0 : index
      %154 = vector.load %arg13[%c0_59, %c0_60] : memref<16x128xbf16, #tpu.memory_space<vmem>>, vector<16x128xbf16>
      tpu.vector_store %arg13[%c0_59, %c0_60], %153 {strides = array<i32>} : memref<16x128xbf16, #tpu.memory_space<vmem>>, vector<16x128xbf16>,
      %155 = vector.broadcast %4 : vector<1x128xf32> to vector<16x128xf32>
      %156 = arith.addf %130, %155 : vector<16x128xf32>
      %c0_61 = arith.constant 0 : index
      %c0_62 = arith.constant 0 : index
      %157 = vector.load %arg14[%c0_61, %c0_62] : memref<16x128xf32, #tpu.memory_space<vmem>>, vector<16x128xf32>
      tpu.vector_store %arg14[%c0_61, %c0_62], %156 {strides = array<i32>} : memref<16x128xf32, #tpu.memory_space<vmem>>, vector<16x128xf32>,
    } else {
    }
    %c0_7 = arith.constant 0 : index
    %c0_8 = arith.constant 0 : index
    %9 = vector.load %arg13[%c0_7, %c0_8] : memref<16x128xbf16, #tpu.memory_space<vmem>>, vector<16x128xbf16>
    %10 = arith.index_cast %arg1 : i32 to index
    %c0_9 = arith.constant 0 : index
    %c0_10 = arith.constant 0 : index
    %11 = vector.load %arg6[%10, %c0_9, %c0_10] : memref<1x3x128xf32, #tpu.memory_space<vmem>>, vector<1x3x128xf32>
    %12 = vector.shape_cast %11 : vector<1x3x128xf32> to vector<3x128xf32>
    %13 = arith.index_cast %arg1 : i32 to index
    %c0_11 = arith.constant 0 : index
    %c0_12 = arith.constant 0 : index
    %14 = vector.load %arg3[%13, %c0_11, %c0_12] : memref<1x128x128xbf16, #tpu.memory_space<vmem>>, vector<1x128x128xbf16>
    %15 = vector.shape_cast %14 : vector<1x128x128xbf16> to vector<128x128xbf16>
    %cst = arith.constant dense<0.000000e+00> : vector<16x128xf32>
    %16 = tpu.matmul %9, %15, %cst {dimension_numbers = #tpu.dot_dimension_numbers<[1], [0], [0], [1], [0, 0, 1, 1], [], []>} : vector<16x128xbf16>, vector<128x128xbf16>, vector<16x128xf32> -> vector<16x128xf32>
    %17 = vector.extract_strided_slice %12 {offsets = [0, 0], sizes = [1, 128], strides = [1, 1]} : vector<3x128xf32> to vector<1x128xf32>
    %18 = vector.broadcast %17 : vector<1x128xf32> to vector<16x128xf32>
    %19 = arith.addf %16, %18 : vector<16x128xf32>
    %20 = arith.index_cast %arg1 : i32 to index
    %c0_13 = arith.constant 0 : index
    %c0_14 = arith.constant 0 : index
    %21 = vector.load %arg4[%20, %c0_13, %c0_14] : memref<1x128x128xbf16, #tpu.memory_space<vmem>>, vector<1x128x128xbf16>
    %22 = vector.shape_cast %21 : vector<1x128x128xbf16> to vector<128x128xbf16>
    %cst_15 = arith.constant dense<0.000000e+00> : vector<16x128xf32>
    %23 = tpu.matmul %9, %22, %cst_15 {dimension_numbers = #tpu.dot_dimension_numbers<[1], [0], [0], [1], [0, 0, 1, 1], [], []>} : vector<16x128xbf16>, vector<128x128xbf16>, vector<16x128xf32> -> vector<16x128xf32>
    %24 = vector.extract_strided_slice %12 {offsets = [1, 0], sizes = [1, 128], strides = [1, 1]} : vector<3x128xf32> to vector<1x128xf32>
    %25 = vector.broadcast %24 : vector<1x128xf32> to vector<16x128xf32>
    %26 = arith.addf %23, %25 : vector<16x128xf32>
    %27 = arith.index_cast %arg1 : i32 to index
    %c0_16 = arith.constant 0 : index
    %c0_17 = arith.constant 0 : index
    %28 = vector.load %arg5[%27, %c0_16, %c0_17] : memref<1x128x128xbf16, #tpu.memory_space<vmem>>, vector<1x128x128xbf16>
    %29 = vector.shape_cast %28 : vector<1x128x128xbf16> to vector<128x128xbf16>
    %cst_18 = arith.constant dense<0.000000e+00> : vector<16x128xf32>
    %30 = tpu.matmul %9, %29, %cst_18 {dimension_numbers = #tpu.dot_dimension_numbers<[1], [0], [0], [1], [0, 0, 1, 1], [], []>} : vector<16x128xbf16>, vector<128x128xbf16>, vector<16x128xf32> -> vector<16x128xf32>
    %31 = vector.extract_strided_slice %12 {offsets = [2, 0], sizes = [1, 128], strides = [1, 1]} : vector<3x128xf32> to vector<1x128xf32>
    %32 = vector.broadcast %31 : vector<1x128xf32> to vector<16x128xf32>
    %33 = arith.addf %30, %32 : vector<16x128xf32>
    %34 = vector.extract_strided_slice %19 {offsets = [0, 0], sizes = [16, 32], strides = [1, 1]} : vector<16x128xf32> to vector<16x32xf32>
    %35 = arith.truncf %34 : vector<16x32xf32> to vector<16x32xbf16>
    %36 = vector.extract_strided_slice %26 {offsets = [0, 0], sizes = [16, 32], strides = [1, 1]} : vector<16x128xf32> to vector<16x32xf32>
    %37 = arith.truncf %36 : vector<16x32xf32> to vector<16x32xbf16>
    %38 = vector.extract_strided_slice %33 {offsets = [0, 0], sizes = [16, 32], strides = [1, 1]} : vector<16x128xf32> to vector<16x32xf32>
    %39 = arith.truncf %38 : vector<16x32xf32> to vector<16x32xbf16>
    %cst_19 = arith.constant dense<0.000000e+00> : vector<16x16xf32>
    %40 = tpu.matmul %35, %37, %cst_19 {dimension_numbers = #tpu.dot_dimension_numbers<[1], [1], [0], [0], [0, 0, 1, 0], [], []>} : vector<16x32xbf16>, vector<16x32xbf16>, vector<16x16xf32> -> vector<16x16xf32>
    %cst_20 = arith.constant dense<0xFF800000> : vector<16xf32>
    %41 = vector.multi_reduction <maximumf>, %40, %cst_20 [1] : vector<16x16xf32> to vector<16xf32>
    %42 = vector.shape_cast %41 : vector<16xf32> to vector<16x1xf32>
    %43 = vector.broadcast %42 : vector<16x1xf32> to vector<16x16xf32>
    %44 = arith.subf %40, %43 : vector<16x16xf32>
    %45 = math.exp %44 : vector<16x16xf32>
    %cst_21 = arith.constant dense<0.000000e+00> : vector<16xf32>
    %46 = vector.multi_reduction <add>, %45, %cst_21 [1] : vector<16x16xf32> to vector<16xf32>
    %47 = vector.shape_cast %46 : vector<16xf32> to vector<16x1xf32>
    %48 = tpu.reciprocal %47 {approx = true} : vector<16x1xf32> -> vector<16x1xf32>
    %49 = vector.broadcast %48 : vector<16x1xf32> to vector<16x16xf32>
    %50 = arith.mulf %45, %49 : vector<16x16xf32>
    %51 = arith.truncf %50 : vector<16x16xf32> to vector<16x16xbf16>
    %cst_22 = arith.constant dense<0.000000e+00> : vector<16x32xf32>
    %52 = tpu.matmul %51, %39, %cst_22 {dimension_numbers = #tpu.dot_dimension_numbers<[1], [0], [0], [1], [0, 0, 1, 1], [], []>} : vector<16x16xbf16>, vector<16x32xbf16>, vector<16x32xf32> -> vector<16x32xf32>
    %53 = arith.truncf %52 : vector<16x32xf32> to vector<16x32xbf16>
    %c0_23 = arith.constant 0 : index
    %c0_24 = arith.constant 0 : index
    %54 = vector.load %arg15[%c0_23, %c0_24] : memref<16x128xbf16, #tpu.memory_space<vmem>>, vector<16x32xbf16>
    tpu.vector_store %arg15[%c0_23, %c0_24], %53 {strides = array<i32>} : memref<16x128xbf16, #tpu.memory_space<vmem>>, vector<16x32xbf16>,
    %55 = vector.extract_strided_slice %19 {offsets = [0, 32], sizes = [16, 32], strides = [1, 1]} : vector<16x128xf32> to vector<16x32xf32>
    %56 = arith.truncf %55 : vector<16x32xf32> to vector<16x32xbf16>
    %57 = vector.extract_strided_slice %26 {offsets = [0, 32], sizes = [16, 32], strides = [1, 1]} : vector<16x128xf32> to vector<16x32xf32>
    %58 = arith.truncf %57 : vector<16x32xf32> to vector<16x32xbf16>
    %59 = vector.extract_strided_slice %33 {offsets = [0, 32], sizes = [16, 32], strides = [1, 1]} : vector<16x128xf32> to vector<16x32xf32>
    %60 = arith.truncf %59 : vector<16x32xf32> to vector<16x32xbf16>
    %cst_25 = arith.constant dense<0.000000e+00> : vector<16x16xf32>
    %61 = tpu.matmul %56, %58, %cst_25 {dimension_numbers = #tpu.dot_dimension_numbers<[1], [1], [0], [0], [0, 0, 1, 0], [], []>} : vector<16x32xbf16>, vector<16x32xbf16>, vector<16x16xf32> -> vector<16x16xf32>
    %cst_26 = arith.constant dense<0xFF800000> : vector<16xf32>
    %62 = vector.multi_reduction <maximumf>, %61, %cst_26 [1] : vector<16x16xf32> to vector<16xf32>
    %63 = vector.shape_cast %62 : vector<16xf32> to vector<16x1xf32>
    %64 = vector.broadcast %63 : vector<16x1xf32> to vector<16x16xf32>
    %65 = arith.subf %61, %64 : vector<16x16xf32>
    %66 = math.exp %65 : vector<16x16xf32>
    %cst_27 = arith.constant dense<0.000000e+00> : vector<16xf32>
    %67 = vector.multi_reduction <add>, %66, %cst_27 [1] : vector<16x16xf32> to vector<16xf32>
    %68 = vector.shape_cast %67 : vector<16xf32> to vector<16x1xf32>
    %69 = tpu.reciprocal %68 {approx = true} : vector<16x1xf32> -> vector<16x1xf32>
    %70 = vector.broadcast %69 : vector<16x1xf32> to vector<16x16xf32>
    %71 = arith.mulf %66, %70 : vector<16x16xf32>
    %72 = arith.truncf %71 : vector<16x16xf32> to vector<16x16xbf16>
    %cst_28 = arith.constant dense<0.000000e+00> : vector<16x32xf32>
    %73 = tpu.matmul %72, %60, %cst_28 {dimension_numbers = #tpu.dot_dimension_numbers<[1], [0], [0], [1], [0, 0, 1, 1], [], []>} : vector<16x16xbf16>, vector<16x32xbf16>, vector<16x32xf32> -> vector<16x32xf32>
    %74 = arith.truncf %73 : vector<16x32xf32> to vector<16x32xbf16>
    %c0_29 = arith.constant 0 : index
    %c32 = arith.constant 32 : index
    %75 = vector.load %arg15[%c0_29, %c32] : memref<16x128xbf16, #tpu.memory_space<vmem>>, vector<16x32xbf16>
    tpu.vector_store %arg15[%c0_29, %c32], %74 {strides = array<i32>} : memref<16x128xbf16, #tpu.memory_space<vmem>>, vector<16x32xbf16>,
    %76 = vector.extract_strided_slice %19 {offsets = [0, 64], sizes = [16, 32], strides = [1, 1]} : vector<16x128xf32> to vector<16x32xf32>
    %77 = arith.truncf %76 : vector<16x32xf32> to vector<16x32xbf16>
    %78 = vector.extract_strided_slice %26 {offsets = [0, 64], sizes = [16, 32], strides = [1, 1]} : vector<16x128xf32> to vector<16x32xf32>
    %79 = arith.truncf %78 : vector<16x32xf32> to vector<16x32xbf16>
    %80 = vector.extract_strided_slice %33 {offsets = [0, 64], sizes = [16, 32], strides = [1, 1]} : vector<16x128xf32> to vector<16x32xf32>
    %81 = arith.truncf %80 : vector<16x32xf32> to vector<16x32xbf16>
    %cst_30 = arith.constant dense<0.000000e+00> : vector<16x16xf32>
    %82 = tpu.matmul %77, %79, %cst_30 {dimension_numbers = #tpu.dot_dimension_numbers<[1], [1], [0], [0], [0, 0, 1, 0], [], []>} : vector<16x32xbf16>, vector<16x32xbf16>, vector<16x16xf32> -> vector<16x16xf32>
    %cst_31 = arith.constant dense<0xFF800000> : vector<16xf32>
    %83 = vector.multi_reduction <maximumf>, %82, %cst_31 [1] : vector<16x16xf32> to vector<16xf32>
    %84 = vector.shape_cast %83 : vector<16xf32> to vector<16x1xf32>
    %85 = vector.broadcast %84 : vector<16x1xf32> to vector<16x16xf32>
    %86 = arith.subf %82, %85 : vector<16x16xf32>
    %87 = math.exp %86 : vector<16x16xf32>
    %cst_32 = arith.constant dense<0.000000e+00> : vector<16xf32>
    %88 = vector.multi_reduction <add>, %87, %cst_32 [1] : vector<16x16xf32> to vector<16xf32>
    %89 = vector.shape_cast %88 : vector<16xf32> to vector<16x1xf32>
    %90 = tpu.reciprocal %89 {approx = true} : vector<16x1xf32> -> vector<16x1xf32>
    %91 = vector.broadcast %90 : vector<16x1xf32> to vector<16x16xf32>
    %92 = arith.mulf %87, %91 : vector<16x16xf32>
    %93 = arith.truncf %92 : vector<16x16xf32> to vector<16x16xbf16>
    %cst_33 = arith.constant dense<0.000000e+00> : vector<16x32xf32>
    %94 = tpu.matmul %93, %81, %cst_33 {dimension_numbers = #tpu.dot_dimension_numbers<[1], [0], [0], [1], [0, 0, 1, 1], [], []>} : vector<16x16xbf16>, vector<16x32xbf16>, vector<16x32xf32> -> vector<16x32xf32>
    %95 = arith.truncf %94 : vector<16x32xf32> to vector<16x32xbf16>
    %c0_34 = arith.constant 0 : index
    %c64 = arith.constant 64 : index
    %96 = vector.load %arg15[%c0_34, %c64] : memref<16x128xbf16, #tpu.memory_space<vmem>>, vector<16x32xbf16>
    tpu.vector_store %arg15[%c0_34, %c64], %95 {strides = array<i32>} : memref<16x128xbf16, #tpu.memory_space<vmem>>, vector<16x32xbf16>,
    %97 = vector.extract_strided_slice %19 {offsets = [0, 96], sizes = [16, 32], strides = [1, 1]} : vector<16x128xf32> to vector<16x32xf32>
    %98 = arith.truncf %97 : vector<16x32xf32> to vector<16x32xbf16>
    %99 = vector.extract_strided_slice %26 {offsets = [0, 96], sizes = [16, 32], strides = [1, 1]} : vector<16x128xf32> to vector<16x32xf32>
    %100 = arith.truncf %99 : vector<16x32xf32> to vector<16x32xbf16>
    %101 = vector.extract_strided_slice %33 {offsets = [0, 96], sizes = [16, 32], strides = [1, 1]} : vector<16x128xf32> to vector<16x32xf32>
    %102 = arith.truncf %101 : vector<16x32xf32> to vector<16x32xbf16>
    %cst_35 = arith.constant dense<0.000000e+00> : vector<16x16xf32>
    %103 = tpu.matmul %98, %100, %cst_35 {dimension_numbers = #tpu.dot_dimension_numbers<[1], [1], [0], [0], [0, 0, 1, 0], [], []>} : vector<16x32xbf16>, vector<16x32xbf16>, vector<16x16xf32> -> vector<16x16xf32>
    %cst_36 = arith.constant dense<0xFF800000> : vector<16xf32>
    %104 = vector.multi_reduction <maximumf>, %103, %cst_36 [1] : vector<16x16xf32> to vector<16xf32>
    %105 = vector.shape_cast %104 : vector<16xf32> to vector<16x1xf32>
    %106 = vector.broadcast %105 : vector<16x1xf32> to vector<16x16xf32>
    %107 = arith.subf %103, %106 : vector<16x16xf32>
    %108 = math.exp %107 : vector<16x16xf32>
    %cst_37 = arith.constant dense<0.000000e+00> : vector<16xf32>
    %109 = vector.multi_reduction <add>, %108, %cst_37 [1] : vector<16x16xf32> to vector<16xf32>
    %110 = vector.shape_cast %109 : vector<16xf32> to vector<16x1xf32>
    %111 = tpu.reciprocal %110 {approx = true} : vector<16x1xf32> -> vector<16x1xf32>
    %112 = vector.broadcast %111 : vector<16x1xf32> to vector<16x16xf32>
    %113 = arith.mulf %108, %112 : vector<16x16xf32>
    %114 = arith.truncf %113 : vector<16x16xf32> to vector<16x16xbf16>
    %cst_38 = arith.constant dense<0.000000e+00> : vector<16x32xf32>
    %115 = tpu.matmul %114, %102, %cst_38 {dimension_numbers = #tpu.dot_dimension_numbers<[1], [0], [0], [1], [0, 0, 1, 1], [], []>} : vector<16x16xbf16>, vector<16x32xbf16>, vector<16x32xf32> -> vector<16x32xf32>
    %116 = arith.truncf %115 : vector<16x32xf32> to vector<16x32xbf16>
    %c0_39 = arith.constant 0 : index
    %c96 = arith.constant 96 : index
    %117 = vector.load %arg15[%c0_39, %c96] : memref<16x128xbf16, #tpu.memory_space<vmem>>, vector<16x32xbf16>
    tpu.vector_store %arg15[%c0_39, %c96], %116 {strides = array<i32>} : memref<16x128xbf16, #tpu.memory_space<vmem>>, vector<16x32xbf16>,
    %c0_40 = arith.constant 0 : index
    %c0_41 = arith.constant 0 : index
    %118 = vector.load %arg14[%c0_40, %c0_41] : memref<16x128xf32, #tpu.memory_space<vmem>>, vector<16x128xf32>
    %c0_42 = arith.constant 0 : index
    %c0_43 = arith.constant 0 : index
    %119 = vector.load %arg15[%c0_42, %c0_43] : memref<16x128xbf16, #tpu.memory_space<vmem>>, vector<16x128xbf16>
    %120 = arith.index_cast %arg1 : i32 to index
    %c0_44 = arith.constant 0 : index
    %c0_45 = arith.constant 0 : index
    %121 = vector.load %arg7[%120, %c0_44, %c0_45] : memref<1x128x128xbf16, #tpu.memory_space<vmem>>, vector<1x128x128xbf16>
    %122 = vector.shape_cast %121 : vector<1x128x128xbf16> to vector<128x128xbf16>
    %cst_46 = arith.constant dense<0.000000e+00> : vector<16x128xf32>
    %123 = tpu.matmul %119, %122, %cst_46 {dimension_numbers = #tpu.dot_dimension_numbers<[1], [0], [0], [1], [0, 0, 1, 1], [], []>} : vector<16x128xbf16>, vector<128x128xbf16>, vector<16x128xf32> -> vector<16x128xf32>
    %124 = arith.addf %118, %123 : vector<16x128xf32>
    %c0_47 = arith.constant 0 : index
    %c0_48 = arith.constant 0 : index
    %125 = vector.load %arg14[%c0_47, %c0_48] : memref<16x128xf32, #tpu.memory_space<vmem>>, vector<16x128xf32>
    tpu.vector_store %arg14[%c0_47, %c0_48], %124 {strides = array<i32>} : memref<16x128xf32, #tpu.memory_space<vmem>>, vector<16x128xf32>,
    %c0_i32_49 = arith.constant 0 : i32
    %126 = arith.cmpi eq, %arg1, %c0_i32_49 : i32
    %127 = arith.extui %126 : i1 to i32
    %c0_i32_50 = arith.constant 0 : i32
    %128 = arith.cmpi ne, %127, %c0_i32_50 : i32
    scf.if %128 {
      %c0_51 = arith.constant 0 : index
      %c0_52 = arith.constant 0 : index
      %129 = vector.load %arg14[%c0_51, %c0_52] : memref<16x128xf32, #tpu.memory_space<vmem>>, vector<16x128xf32>
      %cst_53 = arith.constant dense<0.000000e+00> : vector<16xf32>
      %130 = vector.multi_reduction <add>, %129, %cst_53 [1] : vector<16x128xf32> to vector<16xf32>
      %131 = vector.shape_cast %130 : vector<16xf32> to vector<16x1xf32>
      %cst_54 = arith.constant 1.280000e+02 : f32
      %132 = vector.broadcast %cst_54 : f32 to vector<16x1xf32>
      %133 = arith.divf %131, %132 : vector<16x1xf32>
      %134 = vector.broadcast %133 : vector<16x1xf32> to vector<16x128xf32>
      %135 = arith.subf %129, %134 : vector<16x128xf32>
      %136 = arith.mulf %135, %135 : vector<16x128xf32>
      %cst_55 = arith.constant dense<0.000000e+00> : vector<16xf32>
      %137 = vector.multi_reduction <add>, %136, %cst_55 [1] : vector<16x128xf32> to vector<16xf32>
      %138 = vector.shape_cast %137 : vector<16xf32> to vector<16x1xf32>
      %cst_56 = arith.constant 1.280000e+02 : f32
      %139 = vector.broadcast %cst_56 : f32 to vector<16x1xf32>
      %140 = arith.divf %138, %139 : vector<16x1xf32>
      %141 = vector.broadcast %133 : vector<16x1xf32> to vector<16x128xf32>
      %142 = arith.subf %129, %141 : vector<16x128xf32>
      %cst_57 = arith.constant 9.99999974E-6 : f32
      %143 = vector.broadcast %cst_57 : f32 to vector<16x1xf32>
      %144 = arith.addf %140, %143 : vector<16x1xf32>
      %145 = math.rsqrt %144 : vector<16x1xf32>
      %146 = vector.broadcast %145 : vector<16x1xf32> to vector<16x128xf32>
      %147 = arith.mulf %142, %146 : vector<16x128xf32>
      %148 = vector.broadcast %2 : vector<1x128xf32> to vector<16x128xf32>
      %149 = arith.mulf %147, %148 : vector<16x128xf32>
      %150 = vector.broadcast %3 : vector<1x128xf32> to vector<16x128xf32>
      %151 = arith.addf %149, %150 : vector<16x128xf32>
      %152 = arith.truncf %151 : vector<16x128xf32> to vector<16x128xbf16>
      %c0_58 = arith.constant 0 : index
      %c0_59 = arith.constant 0 : index
      %153 = vector.load %arg8[%c0_58, %c0_59] : memref<128x256xbf16, #tpu.memory_space<vmem>>, vector<128x256xbf16>
      %cst_60 = arith.constant dense<0.000000e+00> : vector<16x256xf32>
      %154 = tpu.matmul %152, %153, %cst_60 {dimension_numbers = #tpu.dot_dimension_numbers<[1], [0], [0], [1], [0, 0, 1, 1], [], []>} : vector<16x128xbf16>, vector<128x256xbf16>, vector<16x256xf32> -> vector<16x256xf32>
      %c0_61 = arith.constant 0 : index
      %c0_62 = arith.constant 0 : index
      %155 = vector.load %arg9[%c0_61, %c0_62] : memref<1x256xf32, #tpu.memory_space<vmem>>, vector<1x256xf32>
      %156 = vector.broadcast %155 : vector<1x256xf32> to vector<16x256xf32>
      %157 = arith.addf %154, %156 : vector<16x256xf32>
      %cst_63 = arith.constant 0.000000e+00 : f32
      %158 = vector.broadcast %cst_63 : f32 to vector<16x256xf32>
      %159 = arith.maximumf %157, %158 : vector<16x256xf32>
      %160 = arith.truncf %159 : vector<16x256xf32> to vector<16x256xbf16>
      %c0_64 = arith.constant 0 : index
      %c0_65 = arith.constant 0 : index
      %161 = vector.load %arg10[%c0_64, %c0_65] : memref<256x128xbf16, #tpu.memory_space<vmem>>, vector<256x128xbf16>
      %cst_66 = arith.constant dense<0.000000e+00> : vector<16x128xf32>
      %162 = tpu.matmul %160, %161, %cst_66 {dimension_numbers = #tpu.dot_dimension_numbers<[1], [0], [0], [1], [0, 0, 1, 1], [], []>} : vector<16x256xbf16>, vector<256x128xbf16>, vector<16x128xf32> -> vector<16x128xf32>
      %163 = arith.addf %129, %162 : vector<16x128xf32>
      %164 = vector.broadcast %5 : vector<1x128xf32> to vector<16x128xf32>
      %165 = arith.addf %163, %164 : vector<16x128xf32>
      %c0_67 = arith.constant 0 : index
      %c0_68 = arith.constant 0 : index
      %c0_69 = arith.constant 0 : index
      %166 = vector.load %arg12[%c0_67, %c0_68, %c0_69] : memref<1x16x128xf32, #tpu.memory_space<vmem>>, vector<1x16x128xf32>
      %167 = vector.shape_cast %166 : vector<1x16x128xf32> to vector<16x128xf32>
      %168 = vector.shape_cast %165 : vector<16x128xf32> to vector<1x16x128xf32>
      tpu.vector_store %arg12[%c0_67, %c0_68, %c0_69], %168 {strides = array<i32>} : memref<1x16x128xf32, #tpu.memory_space<vmem>>, vector<1x16x128xf32>,
    } else {
    }
    return
  }
  func.func @transform_0(%arg0: i32, %arg1: i32) -> (i32, i32, i32) {
    %c0_i32 = arith.constant 0 : i32
    %c0_i32_0 = arith.constant 0 : i32
    %c0_i32_1 = arith.constant 0 : i32
    return %arg0, %c0_i32, %c0_i32_0 : i32, i32, i32
  }
  func.func @transform_1(%arg0: i32, %arg1: i32) -> (i32, i32, i32) {
    %c0_i32 = arith.constant 0 : i32
    %c0_i32_0 = arith.constant 0 : i32
    %c0_i32_1 = arith.constant 0 : i32
    %c0_i32_2 = arith.constant 0 : i32
    return %c0_i32, %c0_i32_0, %c0_i32_1 : i32, i32, i32
  }
  func.func @transform_2(%arg0: i32, %arg1: i32) -> (i32, i32, i32) {
    %c0_i32 = arith.constant 0 : i32
    %c0_i32_0 = arith.constant 0 : i32
    %c0_i32_1 = arith.constant 0 : i32
    %c0_i32_2 = arith.constant 0 : i32
    return %c0_i32, %c0_i32_0, %c0_i32_1 : i32, i32, i32
  }
  func.func @transform_3(%arg0: i32, %arg1: i32) -> (i32, i32, i32) {
    %c0_i32 = arith.constant 0 : i32
    %c0_i32_0 = arith.constant 0 : i32
    %c0_i32_1 = arith.constant 0 : i32
    %c0_i32_2 = arith.constant 0 : i32
    return %c0_i32, %c0_i32_0, %c0_i32_1 : i32, i32, i32
  }
  func.func @transform_4(%arg0: i32, %arg1: i32) -> (i32, i32, i32) {
    %c0_i32 = arith.constant 0 : i32
    %c0_i32_0 = arith.constant 0 : i32
    %c0_i32_1 = arith.constant 0 : i32
    %c0_i32_2 = arith.constant 0 : i32
    return %c0_i32, %c0_i32_0, %c0_i32_1 : i32, i32, i32
  }
  func.func @transform_5(%arg0: i32, %arg1: i32) -> (i32, i32, i32) {
    %c0_i32 = arith.constant 0 : i32
    %c0_i32_0 = arith.constant 0 : i32
    %c0_i32_1 = arith.constant 0 : i32
    %c0_i32_2 = arith.constant 0 : i32
    return %c0_i32, %c0_i32_0, %c0_i32_1 : i32, i32, i32
  }
  func.func @transform_6(%arg0: i32, %arg1: i32) -> (i32, i32) {
    %c0_i32 = arith.constant 0 : i32
    %c0_i32_0 = arith.constant 0 : i32
    %c0_i32_1 = arith.constant 0 : i32
    return %c0_i32, %c0_i32_0 : i32, i32
  }
  func.func @transform_7(%arg0: i32, %arg1: i32) -> (i32, i32) {
    %c0_i32 = arith.constant 0 : i32
    %c0_i32_0 = arith.constant 0 : i32
    %c0_i32_1 = arith.constant 0 : i32
    return %c0_i32, %c0_i32_0 : i32, i32
  }
  func.func @transform_8(%arg0: i32, %arg1: i32) -> (i32, i32) {
    %c0_i32 = arith.constant 0 : i32
    %c0_i32_0 = arith.constant 0 : i32
    %c0_i32_1 = arith.constant 0 : i32
    return %c0_i32, %c0_i32_0 : i32, i32
  }
  func.func @transform_9(%arg0: i32, %arg1: i32) -> (i32, i32) {
    %c0_i32 = arith.constant 0 : i32
    %c0_i32_0 = arith.constant 0 : i32
    %c0_i32_1 = arith.constant 0 : i32
    return %c0_i32, %c0_i32_0 : i32, i32
  }
  func.func @transform_10(%arg0: i32, %arg1: i32) -> (i32, i32, i32) {
    %c0_i32 = arith.constant 0 : i32
    %c0_i32_0 = arith.constant 0 : i32
    %c0_i32_1 = arith.constant 0 : i32
    return %arg0, %c0_i32, %c0_i32_0 : i32, i32, i32
  }
}

</mosaic_0001>

<llo_original>
// kernel: tpu_custom_call.1
$region0: #{tpu_custom_call.1}
  #allocation0 [shape = 'u32[]', space=smem, size = 0x4, offset = 0x4, fixed_abs, tag = 'smem constant byte address 0x4 - core index']
  #allocation1 [shape = 'u32[144,128]{1,0:T(1,128)}', space=vmem, size = 0x12000, scoped, tag = 'internal scratch']
  #allocation2 [shape = 'bf16[16,128]{1,0:T(16,128)(2,1)}', space=vmem, size = 0x1000, scoped, tag = 'scratch operand']
  #allocation3 [shape = 'f32[16,128]{1,0:T(8,128)}', space=vmem, size = 0x2000, scoped, tag = 'scratch operand']
  #allocation4 [shape = 'bf16[16,128]{1,0:T(16,128)(2,1)}', space=vmem, size = 0x1000, scoped, tag = 'scratch operand']
  %s0 = inlined_call_operand.hbm [shape: f32[2,16,128], index: 0, kind: input, shape index: {}]
  %s1 = inlined_call_operand.hbm [shape: bf16[1,128,128], index: 1, kind: input, shape index: {}]
  %s2 = inlined_call_operand.hbm [shape: bf16[1,128,128], index: 2, kind: input, shape index: {}]
  %s3 = inlined_call_operand.hbm [shape: bf16[1,128,128], index: 3, kind: input, shape index: {}]
  %s4 = inlined_call_operand.vmem [shape: f32[1,3,128], index: 4, kind: input, shape index: {}]
  %s5 = inlined_call_operand.hbm [shape: bf16[1,128,128], index: 5, kind: input, shape index: {}]
  %s6 = inlined_call_operand.hbm [shape: bf16[128,256], index: 6, kind: input, shape index: {}]
  %s7 = inlined_call_operand.vmem [shape: f32[1,256], index: 7, kind: input, shape index: {}]
  %s8 = inlined_call_operand.hbm [shape: bf16[256,128], index: 8, kind: input, shape index: {}]
  %s9 = inlined_call_operand.vmem [shape: f32[6,128], index: 9, kind: input, shape index: {}]
  %s10 = inlined_call_operand.hbm [shape: f32[2,16,128], index: 10, kind: output, shape index: {}]
  %s11 = sld [smem:[#allocation0]]
  $region109: #{tpu_custom_call.1} parent=0
    _
  %s13 = ssub.s32 1, %s11
  %s14 = scalar_select 0, %s13, %s11
  $region1: #{tpu_custom_call.1} parent=0
    #allocation5 [shape = 'u8[16384]{0}', space=vmem, size = 0x4000, scoped, tag = 'input window, operand 0']
    #allocation6 [shape = 's32[2]{0}', space=sflag, size = 0x8, scoped, tag = 'scoped memory for tpu_custom_call.1']
    #allocation7 [shape = 's32[2]{0}', space=sflag, size = 0x8, scoped, tag = 'scoped memory for tpu_custom_call.1']
    #allocation8 [shape = 'u8[32768]{0}', space=vmem, size = 0x8000, scoped, tag = 'input window, operand 1, single buffered']
    #allocation9 [shape = 's32[1]{0}', space=sflag, size = 0x4, scoped, tag = 'scoped memory for tpu_custom_call.1']
    #allocation10 [shape = 'u8[32768]{0}', space=vmem, size = 0x8000, scoped, tag = 'input window, operand 2, single buffered']
    #allocation11 [shape = 'u8[32768]{0}', space=vmem, size = 0x8000, scoped, tag = 'input window, operand 3, single buffered']
    #allocation12 [shape = 's32[1]{0}', space=sflag, size = 0x4, scoped, tag = 'scoped memory for tpu_custom_call.1']
    #allocation13 [shape = 'u8[32768]{0}', space=vmem, size = 0x8000, scoped, tag = 'input window, operand 5, single buffered']
    #allocation14 [shape = 'u8[65536]{0}', space=vmem, size = 0x10000, scoped, tag = 'input window, operand 6, single buffered']
    #allocation15 [shape = 's32[1]{0}', space=sflag, size = 0x4, scoped, tag = 'scoped memory for tpu_custom_call.1']
    #allocation16 [shape = 'u8[65536]{0}', space=vmem, size = 0x10000, scoped, tag = 'input window, operand 8, single buffered']
    #allocation17 [shape = 'u8[16384]{0}', space=vmem, size = 0x4000, scoped, tag = 'output window, operand 0']
    %15 = vsyncpa [#allocation6], 0
    %s16 = scalar_lea.sflag [#allocation6], 1
    %17 = vsyncpa %s16, 0
    %18 = vsyncpa [#allocation9], 0
    %19 = vsyncpa [#allocation12], 0
    %20 = vsyncpa [#allocation15], 0
    %21 = vsyncpa [#allocation7], 0
    %s22 = scalar_lea.sflag [#allocation7], 1
    %23 = vsyncpa %s22, 0
    loop: start=0, step=1, limit=4
    $region2: #{tpu_custom_call.1} parent=1 // loop_pre_header
      _
    $region3: #{tpu_custom_call.1} parent=1 // loop_header
      %s25 = sphi 0, %s29
      %p26 = scmp.ge.s32.totalorder %s25, 4
      %s32 = sphi 0, %s44
      %s33 = sphi 0, %s40
      %s34 = sphi 0, %s32
      %s35 = sphi 0, %s33
      %s36 = sphi 0, %s34
      %s37 = sphi 0, %s35
      %s47 = sphi 0, %s49
      %s50 = sphi 0, %s47
      %s51 = sphi 0, %s50
      %s67 = sphi 0, %s51
      %s71 = sphi 0, %s71
      %s73 = sphi 0, %s71
      %s74 = sphi 0, %s73
      %s88 = sphi 0, %s74
      %s92 = sphi 0, %s92
      %s94 = sphi 0, %s92
      %s95 = sphi 0, %s94
      %s109 = sphi 0, %s95
      %s113 = sphi 0, %s113
      %s115 = sphi 0, %s113
      %s116 = sphi 0, %s115
      %s130 = sphi 0, %s116
      %s134 = sphi 0, %s134
      %s136 = sphi 0, %s134
      %s137 = sphi 0, %s136
      %s151 = sphi 0, %s137
      %s155 = sphi 0, %s155
      %s157 = sphi 0, %s155
      %s158 = sphi 0, %s157
      %s172 = sphi 0, %s158
      %s176 = sphi 0, %s176
      %s178 = sphi 0, %s176
      %s179 = sphi 0, %s178
      %s193 = sphi 0, %s179
      %s197 = sphi 0, %s197
      %s199 = sphi 0, %s197
      %s200 = sphi 0, %s199
      %s214 = sphi 0, %s200
      %s218 = sphi 0, %s218
      %s220 = sphi 0, %s218
      %s221 = sphi 0, %s220
      %s235 = sphi 0, %s221
      %s239 = sphi 0, %s239
      %s241 = sphi 0, %s239
      %s242 = sphi 0, %s241
      %s256 = sphi 0, %s242
      %s262 = sphi 0, %s264
      %s265 = sphi 0, %s262
      %s266 = sphi 0, %s265
      %s282 = sphi 0, %s266
    $region4: #{tpu_custom_call.1} parent=1 // loop_header_branch
      %28 = sbr.rel (%p26) target = $region8
    $region5: #{tpu_custom_call.1} parent=1 // loop_body
      %s30 = ssub.s32 %s25, 1
      %s31 = ssub.s32 %s25, 2
      %s38 = sadd.s32 1, %s33
      %p39 = scmp.ge.s32.totalorder %s38, 1
      %s40 = scalar_select %p39, 0, %s38
      %s41 = sadd.s32 1, %s32
      %s42 = scalar_select %p39, %s41, %s32
      %p43 = scmp.ge.s32.totalorder %s42, 2
      %s44 = scalar_select %p43, 0, %s42
      %s45 = ssub.s32 %s32, %s44
      %p46 = scmp.eq.s32.totalorder %s45, 0
      %s48 = sadd.s32 %s47, 1
      %s49 = scalar_select %p46, %s47, %s48
      %p52 = pneg %p46
      %p53 = scmp.eq.s32.totalorder %s25, 1
      %p54 = por %p52, %p53
      %p55 = scmp.ne.s32.totalorder %s47, %s50
      %p56 = scmp.eq.s32.totalorder %s25, 0
      %p57 = por %p55, %p56
      %p58 = scmp.ne.s32.totalorder %s47, %s50
      %p59 = scmp.eq.s32.totalorder %s30, 1
      %p60 = por %p58, %p59
      %p61 = scmp.ne.s32.totalorder %s50, %s51
      %p62 = scmp.eq.s32.totalorder %s30, 0
      %p63 = por %p61, %p62
      %p64 = scmp.ne.s32.totalorder %s50, %s51
      %p65 = scmp.eq.s32.totalorder %s31, 1
      %p66 = por %p64, %p65
      %p68 = scmp.ne.s32.totalorder %s51, %s67
      %p69 = scmp.eq.s32.totalorder %s31, 0
      %p70 = por %p68, %p69
      %s72 = sadd.s32 %s71, 1
      %p75 = scmp.eq.s32.totalorder %s25, 1
      %p76 = scmp.ne.s32.totalorder %s71, %s73
      %p77 = scmp.eq.s32.totalorder %s25, 0
      %p78 = por %p76, %p77
      %p79 = scmp.ne.s32.totalorder %s71, %s73
      %p80 = scmp.eq.s32.totalorder %s30, 1
      %p81 = por %p79, %p80
      %p82 = scmp.ne.s32.totalorder %s73, %s74
      %p83 = scmp.eq.s32.totalorder %s30, 0
      %p84 = por %p82, %p83
      %p85 = scmp.ne.s32.totalorder %s73, %s74
      %p86 = scmp.eq.s32.totalorder %s31, 1
      %p87 = por %p85, %p86
      %p89 = scmp.ne.s32.totalorder %s74, %s88
      %p90 = scmp.eq.s32.totalorder %s31, 0
      %p91 = por %p89, %p90
      %s93 = sadd.s32 %s92, 1
      %p96 = scmp.eq.s32.totalorder %s25, 1
      %p97 = scmp.ne.s32.totalorder %s92, %s94
      %p98 = scmp.eq.s32.totalorder %s25, 0
      %p99 = por %p97, %p98
      %p100 = scmp.ne.s32.totalorder %s92, %s94
      %p101 = scmp.eq.s32.totalorder %s30, 1
      %p102 = por %p100, %p101
      %p103 = scmp.ne.s32.totalorder %s94, %s95
      %p104 = scmp.eq.s32.totalorder %s30, 0
      %p105 = por %p103, %p104
      %p106 = scmp.ne.s32.totalorder %s94, %s95
      %p107 = scmp.eq.s32.totalorder %s31, 1
      %p108 = por %p106, %p107
      %p110 = scmp.ne.s32.totalorder %s95, %s109
      %p111 = scmp.eq.s32.totalorder %s31, 0
      %p112 = por %p110, %p111
      %s114 = sadd.s32 %s113, 1
      %p117 = scmp.eq.s32.totalorder %s25, 1
      %p118 = scmp.ne.s32.totalorder %s113, %s115
      %p119 = scmp.eq.s32.totalorder %s25, 0
      %p120 = por %p118, %p119
      %p121 = scmp.ne.s32.totalorder %s113, %s115
      %p122 = scmp.eq.s32.totalorder %s30, 1
      %p123 = por %p121, %p122
      %p124 = scmp.ne.s32.totalorder %s115, %s116
      %p125 = scmp.eq.s32.totalorder %s30, 0
      %p126 = por %p124, %p125
      %p127 = scmp.ne.s32.totalorder %s115, %s116
      %p128 = scmp.eq.s32.totalorder %s31, 1
      %p129 = por %p127, %p128
      %p131 = scmp.ne.s32.totalorder %s116, %s130
      %p132 = scmp.eq.s32.totalorder %s31, 0
      %p133 = por %p131, %p132
      %s135 = sadd.s32 %s134, 1
      %p138 = scmp.eq.s32.totalorder %s25, 1
      %p139 = scmp.ne.s32.totalorder %s134, %s136
      %p140 = scmp.eq.s32.totalorder %s25, 0
      %p141 = por %p139, %p140
      %p142 = scmp.ne.s32.totalorder %s134, %s136
      %p143 = scmp.eq.s32.totalorder %s30, 1
      %p144 = por %p142, %p143
      %p145 = scmp.ne.s32.totalorder %s136, %s137
      %p146 = scmp.eq.s32.totalorder %s30, 0
      %p147 = por %p145, %p146
      %p148 = scmp.ne.s32.totalorder %s136, %s137
      %p149 = scmp.eq.s32.totalorder %s31, 1
      %p150 = por %p148, %p149
      %p152 = scmp.ne.s32.totalorder %s137, %s151
      %p153 = scmp.eq.s32.totalorder %s31, 0
      %p154 = por %p152, %p153
      %s156 = sadd.s32 %s155, 1
      %p159 = scmp.eq.s32.totalorder %s25, 1
      %p160 = scmp.ne.s32.totalorder %s155, %s157
      %p161 = scmp.eq.s32.totalorder %s25, 0
      %p162 = por %p160, %p161
      %p163 = scmp.ne.s32.totalorder %s155, %s157
      %p164 = scmp.eq.s32.totalorder %s30, 1
      %p165 = por %p163, %p164
      %p166 = scmp.ne.s32.totalorder %s157, %s158
      %p167 = scmp.eq.s32.totalorder %s30, 0
      %p168 = por %p166, %p167
      %p169 = scmp.ne.s32.totalorder %s157, %s158
      %p170 = scmp.eq.s32.totalorder %s31, 1
      %p171 = por %p169, %p170
      %p173 = scmp.ne.s32.totalorder %s158, %s172
      %p174 = scmp.eq.s32.totalorder %s31, 0
      %p175 = por %p173, %p174
      %s177 = sadd.s32 %s176, 1
      %p180 = scmp.eq.s32.totalorder %s25, 1
      %p181 = scmp.ne.s32.totalorder %s176, %s178
      %p182 = scmp.eq.s32.totalorder %s25, 0
      %p183 = por %p181, %p182
      %p184 = scmp.ne.s32.totalorder %s176, %s178
      %p185 = scmp.eq.s32.totalorder %s30, 1
      %p186 = por %p184, %p185
      %p187 = scmp.ne.s32.totalorder %s178, %s179
      %p188 = scmp.eq.s32.totalorder %s30, 0
      %p189 = por %p187, %p188
      %p190 = scmp.ne.s32.totalorder %s178, %s179
      %p191 = scmp.eq.s32.totalorder %s31, 1
      %p192 = por %p190, %p191
      %p194 = scmp.ne.s32.totalorder %s179, %s193
      %p195 = scmp.eq.s32.totalorder %s31, 0
      %p196 = por %p194, %p195
      %s198 = sadd.s32 %s197, 1
      %p201 = scmp.eq.s32.totalorder %s25, 1
      %p202 = scmp.ne.s32.totalorder %s197, %s199
      %p203 = scmp.eq.s32.totalorder %s25, 0
      %p204 = por %p202, %p203
      %p205 = scmp.ne.s32.totalorder %s197, %s199
      %p206 = scmp.eq.s32.totalorder %s30, 1
      %p207 = por %p205, %p206
      %p208 = scmp.ne.s32.totalorder %s199, %s200
      %p209 = scmp.eq.s32.totalorder %s30, 0
      %p210 = por %p208, %p209
      %p211 = scmp.ne.s32.totalorder %s199, %s200
      %p212 = scmp.eq.s32.totalorder %s31, 1
      %p213 = por %p211, %p212
      %p215 = scmp.ne.s32.totalorder %s200, %s214
      %p216 = scmp.eq.s32.totalorder %s31, 0
      %p217 = por %p215, %p216
      %s219 = sadd.s32 %s218, 1
      %p222 = scmp.eq.s32.totalorder %s25, 1
      %p223 = scmp.ne.s32.totalorder %s218, %s220
      %p224 = scmp.eq.s32.totalorder %s25, 0
      %p225 = por %p223, %p224
      %p226 = scmp.ne.s32.totalorder %s218, %s220
      %p227 = scmp.eq.s32.totalorder %s30, 1
      %p228 = por %p226, %p227
      %p229 = scmp.ne.s32.totalorder %s220, %s221
      %p230 = scmp.eq.s32.totalorder %s30, 0
      %p231 = por %p229, %p230
      %p232 = scmp.ne.s32.totalorder %s220, %s221
      %p233 = scmp.eq.s32.totalorder %s31, 1
      %p234 = por %p232, %p233
      %p236 = scmp.ne.s32.totalorder %s221, %s235
      %p237 = scmp.eq.s32.totalorder %s31, 0
      %p238 = por %p236, %p237
      %s240 = sadd.s32 %s239, 1
      %p243 = scmp.eq.s32.totalorder %s25, 1
      %p244 = scmp.ne.s32.totalorder %s239, %s241
      %p245 = scmp.eq.s32.totalorder %s25, 0
      %p246 = por %p244, %p245
      %p247 = scmp.ne.s32.totalorder %s239, %s241
      %p248 = scmp.eq.s32.totalorder %s30, 1
      %p249 = por %p247, %p248
      %p250 = scmp.ne.s32.totalorder %s241, %s242
      %p251 = scmp.eq.s32.totalorder %s30, 0
      %p252 = por %p250, %p251
      %p253 = scmp.ne.s32.totalorder %s241, %s242
      %p254 = scmp.eq.s32.totalorder %s31, 1
      %p255 = por %p253, %p254
      %p257 = scmp.ne.s32.totalorder %s242, %s256
      %p258 = scmp.eq.s32.totalorder %s31, 0
      %p259 = por %p257, %p258
      %s260 = ssub.s32 %s32, %s44
      %p261 = scmp.eq.s32.totalorder %s260, 0
      %s263 = sadd.s32 %s262, 1
      %s264 = scalar_select %p261, %s262, %s263
      %p267 = pneg %p261
      %p268 = scmp.eq.s32.totalorder %s25, 1
      %p269 = por %p267, %p268
      %p270 = scmp.ne.s32.totalorder %s262, %s265
      %p271 = scmp.eq.s32.totalorder %s25, 0
      %p272 = por %p270, %p271
      %p273 = scmp.ne.s32.totalorder %s262, %s265
      %p274 = scmp.eq.s32.totalorder %s30, 1
      %p275 = por %p273, %p274
      %p276 = scmp.ne.s32.totalorder %s265, %s266
      %p277 = scmp.eq.s32.totalorder %s30, 0
      %p278 = por %p276, %p277
      %p279 = scmp.ne.s32.totalorder %s265, %s266
      %p280 = scmp.eq.s32.totalorder %s31, 1
      %p281 = por %p279, %p280
      %p283 = scmp.ne.s32.totalorder %s266, %s282
      %p284 = scmp.eq.s32.totalorder %s31, 0
      %p285 = por %p283, %p284
      %p286 = scmp.le.s32.totalorder 1, %s25
      %p287 = scmp.lt.s32.totalorder %s25, 3
      %p288 = pnand %p286, %p287
      %p289 = pneg %p288
      // Predicated region
      $region9: #{tpu_custom_call.1} parent=5 // pred_check
        _
      $region10: #{tpu_custom_call.1} parent=5 // pred_check_branch
        %291 = sbr.rel (%p288) target = $region12
      $region11: #{tpu_custom_call.1} parent=5 // pred_region
        %s292 = ssub.s32 %s25, 1
        // Predicated region
        $region13: #{tpu_custom_call.1} parent=11 // pred_check
          %p293 = pneg %p84
        $region14: #{tpu_custom_call.1} parent=11 // pred_check_branch
          %295 = sbr.rel (%p293) target = $region16
        $region15: #{tpu_custom_call.1} parent=11 // pred_region
          %s297 = ssub.s32 1024, 1024
          %298 = vsyncadd [#allocation9], %s297
          %s299 = sshll.u32 [#allocation8], 4
          %s300 = int_to_ptr.vmem [resolvable:$true] %s299
          %305 = dma.hbm_to_vmem [thread:$0]  %s1, 1024, %s300, [#allocation9], 64, 64, 4
        $region16: #{tpu_custom_call.1} parent=11 // pred_fallthru
          _
        // Predicated region
        $region17: #{tpu_custom_call.1} parent=11 // pred_check
          %p306 = pneg %p105
        $region18: #{tpu_custom_call.1} parent=11 // pred_check_branch
          %308 = sbr.rel (%p306) target = $region20
        $region19: #{tpu_custom_call.1} parent=11 // pred_region
          %s310 = ssub.s32 1024, 1024
          %311 = vsyncadd [#allocation9], %s310
          %s312 = sshll.u32 [#allocation10], 4
          %s313 = int_to_ptr.vmem [resolvable:$true] %s312
          %318 = dma.hbm_to_vmem [thread:$0]  %s2, 1024, %s313, [#allocation9], 64, 64, 4
        $region20: #{tpu_custom_call.1} parent=11 // pred_fallthru
          _
        // Predicated region
        $region21: #{tpu_custom_call.1} parent=11 // pred_check
          %p319 = pneg %p126
        $region22: #{tpu_custom_call.1} parent=11 // pred_check_branch
          %321 = sbr.rel (%p319) target = $region24
        $region23: #{tpu_custom_call.1} parent=11 // pred_region
          %s323 = ssub.s32 1024, 1024
          %324 = vsyncadd [#allocation12], %s323
          %s325 = sshll.u32 [#allocation11], 4
          %s326 = int_to_ptr.vmem [resolvable:$true] %s325
          %331 = dma.hbm_to_vmem [thread:$0]  %s3, 1024, %s326, [#allocation12], 64, 64, 4
        $region24: #{tpu_custom_call.1} parent=11 // pred_fallthru
          _
        // Predicated region
        $region25: #{tpu_custom_call.1} parent=11 // pred_check
          %p332 = pneg %p147
        $region26: #{tpu_custom_call.1} parent=11 // pred_check_branch
          %334 = sbr.rel (%p332) target = $region28
        $region27: #{tpu_custom_call.1} parent=11 // pred_region
          _
        $region28: #{tpu_custom_call.1} parent=11 // pred_fallthru
          _
        // Predicated region
        $region29: #{tpu_custom_call.1} parent=11 // pred_check
          %p335 = pneg %p168
        $region30: #{tpu_custom_call.1} parent=11 // pred_check_branch
          %337 = sbr.rel (%p335) target = $region32
        $region31: #{tpu_custom_call.1} parent=11 // pred_region
          %s339 = ssub.s32 1024, 1024
          %340 = vsyncadd [#allocation12], %s339
          %s341 = sshll.u32 [#allocation13], 4
          %s342 = int_to_ptr.vmem [resolvable:$true] %s341
          %347 = dma.hbm_to_vmem [thread:$0]  %s5, 1024, %s342, [#allocation12], 64, 64, 4
        $region32: #{tpu_custom_call.1} parent=11 // pred_fallthru
          _
        // Predicated region
        $region33: #{tpu_custom_call.1} parent=11 // pred_check
          %p348 = pneg %p189
        $region34: #{tpu_custom_call.1} parent=11 // pred_check_branch
          %350 = sbr.rel (%p348) target = $region36
        $region35: #{tpu_custom_call.1} parent=11 // pred_region
          %s352 = ssub.s32 2048, 2048
          %353 = vsyncadd [#allocation15], %s352
          %s354 = sshll.u32 [#allocation14], 4
          %s355 = int_to_ptr.vmem [resolvable:$true] %s354
          %360 = dma.hbm_to_vmem [thread:$0]  %s6, 2048, %s355, [#allocation15], 128, 128, 8
        $region36: #{tpu_custom_call.1} parent=11 // pred_fallthru
          _
        // Predicated region
        $region37: #{tpu_custom_call.1} parent=11 // pred_check
          %p361 = pneg %p210
        $region38: #{tpu_custom_call.1} parent=11 // pred_check_branch
          %363 = sbr.rel (%p361) target = $region40
        $region39: #{tpu_custom_call.1} parent=11 // pred_region
          _
        $region40: #{tpu_custom_call.1} parent=11 // pred_fallthru
          _
        // Predicated region
        $region41: #{tpu_custom_call.1} parent=11 // pred_check
          %p364 = pneg %p231
        $region42: #{tpu_custom_call.1} parent=11 // pred_check_branch
          %366 = sbr.rel (%p364) target = $region44
        $region43: #{tpu_custom_call.1} parent=11 // pred_region
          %s368 = ssub.s32 2048, 2048
          %369 = vsyncadd [#allocation15], %s368
          %s370 = sshll.u32 [#allocation16], 4
          %s371 = int_to_ptr.vmem [resolvable:$true] %s370
          %376 = dma.hbm_to_vmem [thread:$0]  %s8, 2048, %s371, [#allocation15], 64, 64, 4
        $region44: #{tpu_custom_call.1} parent=11 // pred_fallthru
          _
        // Predicated region
        $region45: #{tpu_custom_call.1} parent=11 // pred_check
          %p377 = pneg %p252
        $region46: #{tpu_custom_call.1} parent=11 // pred_check_branch
          %379 = sbr.rel (%p377) target = $region48
        $region47: #{tpu_custom_call.1} parent=11 // pred_region
          _
        $region48: #{tpu_custom_call.1} parent=11 // pred_fallthru
          _
      $region12: #{tpu_custom_call.1} parent=5 // pred_fallthru
        _
      %p380 = scmp.lt.s32.totalorder %s25, 2
      // Predicated region
      $region49: #{tpu_custom_call.1} parent=5 // pred_check
        %p381 = pneg %p380
      $region50: #{tpu_custom_call.1} parent=5 // pred_check_branch
        %383 = sbr.rel (%p381) target = $region52
      $region51: #{tpu_custom_call.1} parent=5 // pred_region
        // Predicated region
        $region53: #{tpu_custom_call.1} parent=51 // pred_check
          %p384 = pneg %p57
        $region54: #{tpu_custom_call.1} parent=51 // pred_check_branch
          %386 = sbr.rel (%p384) target = $region56
        $region55: #{tpu_custom_call.1} parent=51 // pred_region
          %s387 = sand.u32 %s47, 1
          %s388 = scalar_lea.sflag [#allocation6], %s387
          %s389 = sand.u32 %s47, 1
          %s390 = smul.addr %s389, 16
          %s391 = scalar_lea.vmem [#allocation5], %s390
          %s393 = ssub.s32 256, 256
          %394 = vsyncadd %s388, %s393
          %s395 = smul.addr %s32, 2
          %s396 = smul.addr %s395, 128
          %s397 = scalar_lea.hbm %s0, %s396
          %s398 = sshll.u32 %s391, 4
          %s399 = int_to_ptr.vmem [resolvable:$true] %s398
          %404 = dma.hbm_to_vmem [thread:$0]  %s397, 256, %s399, %s388, 128, 128, 8
        $region56: #{tpu_custom_call.1} parent=51 // pred_fallthru
          _
      $region52: #{tpu_custom_call.1} parent=5 // pred_fallthru
        _
      %p405 = scmp.le.s32.totalorder 1, %s25
      %p406 = scmp.lt.s32.totalorder %s25, 3
      %p407 = pnand %p405, %p406
      %p408 = pneg %p407
      // Predicated region
      $region57: #{tpu_custom_call.1} parent=5 // pred_check
        _
      $region58: #{tpu_custom_call.1} parent=5 // pred_check_branch
        %410 = sbr.rel (%p407) target = $region60
      $region59: #{tpu_custom_call.1} parent=5 // pred_region
        %s411 = ssub.s32 %s25, 1
        %s412 = sand.u32 %s50, 1
        %s413 = scalar_lea.sflag [#allocation6], %s412
        %s414 = sand.u32 %s50, 1
        %s415 = smul.addr %s414, 16
        %s416 = scalar_lea.vmem [#allocation5], %s415
        // Predicated region
        $region61: #{tpu_custom_call.1} parent=59 // pred_check
          %p417 = pneg %p63
        $region62: #{tpu_custom_call.1} parent=59 // pred_check_branch
          %419 = sbr.rel (%p417) target = $region64
        $region63: #{tpu_custom_call.1} parent=59 // pred_region
          %420 = dma.done %s413, 256
        $region64: #{tpu_custom_call.1} parent=59 // pred_fallthru
          _
        // Predicated region
        $region65: #{tpu_custom_call.1} parent=59 // pred_check
          %p421 = pneg %p84
        $region66: #{tpu_custom_call.1} parent=59 // pred_check_branch
          %423 = sbr.rel (%p421) target = $region68
        $region67: #{tpu_custom_call.1} parent=59 // pred_region
          %424 = dma.done [#allocation9], 1024
        $region68: #{tpu_custom_call.1} parent=59 // pred_fallthru
          _
        // Predicated region
        $region69: #{tpu_custom_call.1} parent=59 // pred_check
          %p425 = pneg %p105
        $region70: #{tpu_custom_call.1} parent=59 // pred_check_branch
          %427 = sbr.rel (%p425) target = $region72
        $region71: #{tpu_custom_call.1} parent=59 // pred_region
          %428 = dma.done [#allocation9], 1024
        $region72: #{tpu_custom_call.1} parent=59 // pred_fallthru
          _
        // Predicated region
        $region73: #{tpu_custom_call.1} parent=59 // pred_check
          %p429 = pneg %p126
        $region74: #{tpu_custom_call.1} parent=59 // pred_check_branch
          %431 = sbr.rel (%p429) target = $region76
        $region75: #{tpu_custom_call.1} parent=59 // pred_region
          %432 = dma.done [#allocation12], 1024
        $region76: #{tpu_custom_call.1} parent=59 // pred_fallthru
          _
        // Predicated region
        $region77: #{tpu_custom_call.1} parent=59 // pred_check
          %p433 = pneg %p168
        $region78: #{tpu_custom_call.1} parent=59 // pred_check_branch
          %435 = sbr.rel (%p433) target = $region80
        $region79: #{tpu_custom_call.1} parent=59 // pred_region
          %436 = dma.done [#allocation12], 1024
        $region80: #{tpu_custom_call.1} parent=59 // pred_fallthru
          _
        // Predicated region
        $region81: #{tpu_custom_call.1} parent=59 // pred_check
          %p437 = pneg %p189
        $region82: #{tpu_custom_call.1} parent=59 // pred_check_branch
          %439 = sbr.rel (%p437) target = $region84
        $region83: #{tpu_custom_call.1} parent=59 // pred_region
          %440 = dma.done [#allocation15], 2048
        $region84: #{tpu_custom_call.1} parent=59 // pred_fallthru
          _
        // Predicated region
        $region85: #{tpu_custom_call.1} parent=59 // pred_check
          %p441 = pneg %p231
        $region86: #{tpu_custom_call.1} parent=59 // pred_check_branch
          %443 = sbr.rel (%p441) target = $region88
        $region87: #{tpu_custom_call.1} parent=59 // pred_region
          %444 = dma.done [#allocation15], 2048
        $region88: #{tpu_custom_call.1} parent=59 // pred_fallthru
          _
        %s445 = sand.u32 %s50, 1
        %s446 = scalar_lea.sflag [#allocation6], %s445
        %s447 = sand.u32 %s50, 1
        %s448 = smul.addr %s447, 16
        %s449 = scalar_lea.vmem [#allocation5], %s448
        %p450 = pneg %p63
        %p451 = pneg %p60
        %p452 = pneg %p84
        %p453 = pneg %p81
        %p454 = pneg %p105
        %p455 = pneg %p102
        %p456 = pneg %p126
        %p457 = pneg %p123
        %p458 = pneg %p147
        %p459 = pneg %p144
        %p460 = pneg %p168
        %p461 = pneg %p165
        %p462 = pneg %p189
        %p463 = pneg %p186
        %p464 = pneg %p210
        %p465 = pneg %p207
        %p466 = pneg %p231
        %p467 = pneg %p228
        %p468 = pneg %p252
        %p469 = pneg %p249
        %p470 = pneg %p278
        %p471 = pneg %p275
        %s472 = sand.u32 %s265, 1
        %s473 = scalar_lea.sflag [#allocation7], %s472
        %s474 = sand.u32 %s265, 1
        %s475 = smul.addr %s474, 16
        %s476 = scalar_lea.vmem [#allocation17], %s475
        %v478 = vld [vmem:[%s9] sm:$0x1]
        %v479 = vld [vmem:[%s9 + $0x1] sm:$0x1]
        %v480 = vld [vmem:[%s9 + $0x2] sm:$0x1]
        %v481 = vld [vmem:[%s9 + $0x3] sm:$0x1]
        %v482 = vld [vmem:[%s9 + $0x4] sm:$0x1]
        %v483 = vld [vmem:[%s9 + $0x5] sm:$0x1]
        %p484 = scmp.eq.s32.totalorder %s35, 0
        // Predicated region
        $region89: #{tpu_custom_call.1} parent=59 // pred_check
          %p485 = pneg %p484
        $region90: #{tpu_custom_call.1} parent=59 // pred_check_branch
          %487 = sbr.rel (%p485) target = $region92
        $region91: #{tpu_custom_call.1} parent=59 // pred_region
          %v488 = vld [vmem:[%s416] sm:$0xff]
          %v489 = vld [vmem:[%s416 + $0x8] sm:$0xff]
          %490 = vadd.xlane.f32.xlu0 %v488
          %v491 = vpop.xlane.xlu0 %490
          %492 = vadd.xlane.f32.xlu0 %v489
          %v493 = vpop.xlane.xlu0 %492
          %v494 = vrcp.pop 128.0
          %v495 = vmul.f32 %v491, %v494
          %v496 = vmul.f32 %v493, %v494
          %v497 = vsub.f32 %v488, %v495
          %v498 = vsub.f32 %v489, %v496
          %v499 = vmul.f32 %v497, %v497
          %v500 = vmul.f32 %v498, %v498
          %501 = vadd.xlane.f32.xlu0 %v499
          %v502 = vpop.xlane.xlu0 %501
          %503 = vadd.xlane.f32.xlu0 %v500
          %v504 = vpop.xlane.xlu0 %503
          %v505 = vmul.f32 %v502, %v494
          %v506 = vmul.f32 %v504, %v494
          %v507 = vadd.f32 %v505, 1e-05
          %v508 = vadd.f32 %v506, 1e-05
          %v509 = vrsqrt.pop %v507
          %v510 = vrsqrt.pop %v508
          %v511 = vmul.f32 %v497, %v509
          %v512 = vmul.f32 %v498, %v510
          %v513 = vlaneseq
          %v514 = vshrl.u32 %v513, 7
          %v515 = vsub.s32 0, %v514
          %v516 = vrot.slane %v478, %v515
          %v517 = vmul.f32 %v511, %v516
          %v518 = vmul.f32 %v512, %v516
          %v519 = vlaneseq
          %v520 = vshrl.u32 %v519, 7
          %v521 = vsub.s32 0, %v520
          %v522 = vrot.slane %v479, %v521
          %v523 = vadd.f32 %v517, %v522
          %v524 = vadd.f32 %v518, %v522
          %v525 = vpack.c.bf16 %v524, %v523
          %526 = vst [vmem:[#allocation2] sm:$0xff] %v525
          %v527 = vlaneseq
          %v528 = vshrl.u32 %v527, 7
          %v529 = vsub.s32 0, %v528
          %v530 = vrot.slane %v482, %v529
          %v531 = vadd.f32 %v488, %v530
          %v532 = vadd.f32 %v489, %v530
          %533 = vst [vmem:[#allocation3] sm:$0xff] %v531
          %534 = vst [vmem:[#allocation3 + $0x8] sm:$0xff] %v532
        $region92: #{tpu_custom_call.1} parent=59 // pred_fallthru
          _
        %v535 = vld [vmem:[#allocation2] sm:$0xff]
        %s536 = smul.u32 %s35, 4
        %s537 = scalar_lea.vmem %s4, %s536
        %v538 = vld [vmem:[%s537] sm:$0x7]
        %s539 = smul.u32 %s35, 16
        %s540 = smul.addr %s539, 4
        %s541 = scalar_lea.vmem [#allocation8], %s540
        %v542 = vld [vmem:[%s541] sm:$0xf]
        %v543 = vld [vmem:[%s541 + $0x4] sm:$0xf]
        %v544 = vld [vmem:[%s541 + $0x8] sm:$0xf]
        %v545 = vld [vmem:[%s541 + $0xc] sm:$0xf]
        %v546 = vld [vmem:[%s541 + $0x10] sm:$0xf]
        %v547 = vld [vmem:[%s541 + $0x14] sm:$0xf]
        %v548 = vld [vmem:[%s541 + $0x18] sm:$0xf]
        %v549 = vld [vmem:[%s541 + $0x1c] sm:$0xf]
        %v550 = vld [vmem:[%s541 + $0x20] sm:$0xf]
        %v551 = vld [vmem:[%s541 + $0x24] sm:$0xf]
        %v552 = vld [vmem:[%s541 + $0x28] sm:$0xf]
        %v553 = vld [vmem:[%s541 + $0x2c] sm:$0xf]
        %v554 = vld [vmem:[%s541 + $0x30] sm:$0xf]
        %v555 = vld [vmem:[%s541 + $0x34] sm:$0xf]
        %v556 = vld [vmem:[%s541 + $0x38] sm:$0xf]
        %v557 = vld [vmem:[%s541 + $0x3c] sm:$0xf]
        %v558 = vlaneseq
        %v559 = vshrl.u32 %v558, 7
        %v560 = vsub.s32 0, %v559
        %v561 = vrot.slane %v538, %v560
        %v578 = vunpack.c.l.b16 %v542
        %v579 = vunpack.c.l.b16 %v543
        %v580 = vunpack.c.l.b16 %v544
        %v581 = vunpack.c.l.b16 %v545
        %v582 = vunpack.c.l.b16 %v546
        %v583 = vunpack.c.l.b16 %v547
        %v584 = vunpack.c.l.b16 %v548
        %v585 = vunpack.c.l.b16 %v549
        %v586 = vunpack.c.l.b16 %v550
        %v587 = vunpack.c.l.b16 %v551
        %v588 = vunpack.c.l.b16 %v552
        %v589 = vunpack.c.l.b16 %v553
        %v590 = vunpack.c.l.b16 %v554
        %v591 = vunpack.c.l.b16 %v555
        %v592 = vunpack.c.l.b16 %v556
        %v593 = vunpack.c.l.b16 %v557
        %v594 = vpack.c.b16 %v579, %v578
        %v595 = vpack.c.b16 %v581, %v580
        %v596 = vpack.c.b16 %v583, %v582
        %v597 = vpack.c.b16 %v585, %v584
        %v598 = vpack.c.b16 %v587, %v586
        %v599 = vpack.c.b16 %v589, %v588
        %v600 = vpack.c.b16 %v591, %v590
        %v601 = vpack.c.b16 %v593, %v592
        %610 = vmatprep.subr.bf16.mxu0 0
        %611 = vmatpush1.bf16.msra.mxu0 %v594
        %612 = vmatprep.subr.bf16.mxu0 0
        %613 = vmatpush1.bf16.msra.mxu0 %v595
        %614 = vmatprep.subr.bf16.mxu0 0
        %615 = vmatpush1.bf16.msra.mxu0 %v596
        %616 = vmatprep.subr.bf16.mxu0 0
        %617 = vmatpush1.bf16.msra.mxu0 %v597
        %618 = vmatprep.subr.bf16.mxu0 0
        %619 = vmatpush1.bf16.msra.mxu0 %v598
        %620 = vmatprep.subr.bf16.mxu0 0
        %621 = vmatpush1.bf16.msra.mxu0 %v599
        %622 = vmatprep.subr.bf16.mxu0 0
        %623 = vmatpush1.bf16.msra.mxu0 %v600
        %624 = vmatprep.subr.bf16.mxu0 0
        %625 = vmatpush1.bf16.msra.mxu0 %v601
        %626 = vmatprep.subr.bf16.mxu0 0
        %627 = vmatpush1.bf16.msra.mxu0 0
        %628 = vmatprep.subr.bf16.mxu0 0
        %629 = vmatpush1.bf16.msra.mxu0 0
        %630 = vmatprep.subr.bf16.mxu0 0
        %631 = vmatpush1.bf16.msra.mxu0 0
        %632 = vmatprep.subr.bf16.mxu0 0
        %633 = vmatpush1.bf16.msra.mxu0 0
        %634 = vmatprep.subr.bf16.mxu0 0
        %635 = vmatpush1.bf16.msra.mxu0 0
        %636 = vmatprep.subr.bf16.mxu0 0
        %637 = vmatpush1.bf16.msra.mxu0 0
        %638 = vmatprep.subr.bf16.mxu0 0
        %639 = vmatpush1.bf16.msra.mxu0 0
        %640 = vmatprep.subr.bf16.mxu0 0
        %641 = vmatpush1.bf16.msra.mxu0 0
        %642 = vmatprep.mubr.bf16.mxu0 0
        %643 = vmatmul.mubr.bf16.gmra.mrb[0].mxu0 %v535
        %v644 = vpop.f32.mrb[0].mxu0
        %v645 = vadd.f32 %v561, %v644
        %v646 = vpop.f32.mrb[0].mxu0
        %v647 = vpop.f32.mrb[0].mxu0
        %v648 = vadd.f32 %v561, %v647
        %v649 = vpop.f32.mrb[0].mxu0
        %650 = vdwg.mxu0
        %s651 = smul.addr %s539, 4
        %s652 = scalar_lea.vmem [#allocation10], %s651
        %v653 = vld [vmem:[%s652] sm:$0xf]
        %v654 = vld [vmem:[%s652 + $0x4] sm:$0xf]
        %v655 = vld [vmem:[%s652 + $0x8] sm:$0xf]
        %v656 = vld [vmem:[%s652 + $0xc] sm:$0xf]
        %v657 = vld [vmem:[%s652 + $0x10] sm:$0xf]
        %v658 = vld [vmem:[%s652 + $0x14] sm:$0xf]
        %v659 = vld [vmem:[%s652 + $0x18] sm:$0xf]
        %v660 = vld [vmem:[%s652 + $0x1c] sm:$0xf]
        %v661 = vld [vmem:[%s652 + $0x20] sm:$0xf]
        %v662 = vld [vmem:[%s652 + $0x24] sm:$0xf]
        %v663 = vld [vmem:[%s652 + $0x28] sm:$0xf]
        %v664 = vld [vmem:[%s652 + $0x2c] sm:$0xf]
        %v665 = vld [vmem:[%s652 + $0x30] sm:$0xf]
        %v666 = vld [vmem:[%s652 + $0x34] sm:$0xf]
        %v667 = vld [vmem:[%s652 + $0x38] sm:$0xf]
        %v668 = vld [vmem:[%s652 + $0x3c] sm:$0xf]
        %v669 = vlaneseq
        %v670 = vshrl.u32 %v669, 7
        %v671 = vsub.s32 1, %v670
        %v672 = vrot.slane %v538, %v671
        %v689 = vunpack.c.l.b16 %v653
        %v690 = vunpack.c.l.b16 %v654
        %v691 = vunpack.c.l.b16 %v655
        %v692 = vunpack.c.l.b16 %v656
        %v693 = vunpack.c.l.b16 %v657
        %v694 = vunpack.c.l.b16 %v658
        %v695 = vunpack.c.l.b16 %v659
        %v696 = vunpack.c.l.b16 %v660
        %v697 = vunpack.c.l.b16 %v661
        %v698 = vunpack.c.l.b16 %v662
        %v699 = vunpack.c.l.b16 %v663
        %v700 = vunpack.c.l.b16 %v664
        %v701 = vunpack.c.l.b16 %v665
        %v702 = vunpack.c.l.b16 %v666
        %v703 = vunpack.c.l.b16 %v667
        %v704 = vunpack.c.l.b16 %v668
        %v705 = vpack.c.b16 %v690, %v689
        %v706 = vpack.c.b16 %v692, %v691
        %v707 = vpack.c.b16 %v694, %v693
        %v708 = vpack.c.b16 %v696, %v695
        %v709 = vpack.c.b16 %v698, %v697
        %v710 = vpack.c.b16 %v700, %v699
        %v711 = vpack.c.b16 %v702, %v701
        %v712 = vpack.c.b16 %v704, %v703
        %721 = vmatprep.subr.bf16.mxu0 0
        %722 = vmatpush1.bf16.msra.mxu0 %v705
        %723 = vmatprep.subr.bf16.mxu0 0
        %724 = vmatpush1.bf16.msra.mxu0 %v706
        %725 = vmatprep.subr.bf16.mxu0 0
        %726 = vmatpush1.bf16.msra.mxu0 %v707
        %727 = vmatprep.subr.bf16.mxu0 0
        %728 = vmatpush1.bf16.msra.mxu0 %v708
        %729 = vmatprep.subr.bf16.mxu0 0
        %730 = vmatpush1.bf16.msra.mxu0 %v709
        %731 = vmatprep.subr.bf16.mxu0 0
        %732 = vmatpush1.bf16.msra.mxu0 %v710
        %733 = vmatprep.subr.bf16.mxu0 0
        %734 = vmatpush1.bf16.msra.mxu0 %v711
        %735 = vmatprep.subr.bf16.mxu0 0
        %736 = vmatpush1.bf16.msra.mxu0 %v712
        %737 = vmatprep.subr.bf16.mxu0 0
        %738 = vmatpush1.bf16.msra.mxu0 0
        %739 = vmatprep.subr.bf16.mxu0 0
        %740 = vmatpush1.bf16.msra.mxu0 0
        %741 = vmatprep.subr.bf16.mxu0 0
        %742 = vmatpush1.bf16.msra.mxu0 0
        %743 = vmatprep.subr.bf16.mxu0 0
        %744 = vmatpush1.bf16.msra.mxu0 0
        %745 = vmatprep.subr.bf16.mxu0 0
        %746 = vmatpush1.bf16.msra.mxu0 0
        %747 = vmatprep.subr.bf16.mxu0 0
        %748 = vmatpush1.bf16.msra.mxu0 0
        %749 = vmatprep.subr.bf16.mxu0 0
        %750 = vmatpush1.bf16.msra.mxu0 0
        %751 = vmatprep.subr.bf16.mxu0 0
        %752 = vmatpush1.bf16.msra.mxu0 0
        %753 = vmatprep.mubr.bf16.mxu0 0
        %754 = vmatmul.mubr.bf16.gmra.mrb[0].mxu0 %v535
        %v755 = vpop.f32.mrb[0].mxu0
        %v756 = vadd.f32 %v672, %v755
        %v757 = vpop.f32.mrb[0].mxu0
        %v758 = vpop.f32.mrb[0].mxu0
        %v759 = vadd.f32 %v672, %v758
        %v760 = vpop.f32.mrb[0].mxu0
        %761 = vdwg.mxu0
        %s762 = smul.addr %s539, 4
        %s763 = scalar_lea.vmem [#allocation11], %s762
        %v764 = vld [vmem:[%s763] sm:$0xf]
        %v765 = vld [vmem:[%s763 + $0x4] sm:$0xf]
        %v766 = vld [vmem:[%s763 + $0x8] sm:$0xf]
        %v767 = vld [vmem:[%s763 + $0xc] sm:$0xf]
        %v768 = vld [vmem:[%s763 + $0x10] sm:$0xf]
        %v769 = vld [vmem:[%s763 + $0x14] sm:$0xf]
        %v770 = vld [vmem:[%s763 + $0x18] sm:$0xf]
        %v771 = vld [vmem:[%s763 + $0x1c] sm:$0xf]
        %v772 = vld [vmem:[%s763 + $0x20] sm:$0xf]
        %v773 = vld [vmem:[%s763 + $0x24] sm:$0xf]
        %v774 = vld [vmem:[%s763 + $0x28] sm:$0xf]
        %v775 = vld [vmem:[%s763 + $0x2c] sm:$0xf]
        %v776 = vld [vmem:[%s763 + $0x30] sm:$0xf]
        %v777 = vld [vmem:[%s763 + $0x34] sm:$0xf]
        %v778 = vld [vmem:[%s763 + $0x38] sm:$0xf]
        %v779 = vld [vmem:[%s763 + $0x3c] sm:$0xf]
        %v780 = vlaneseq
        %v781 = vshrl.u32 %v780, 7
        %v782 = vsub.s32 2, %v781
        %v783 = vrot.slane %v538, %v782
        %v800 = vunpack.c.l.b16 %v764
        %v801 = vunpack.c.l.b16 %v765
        %v802 = vunpack.c.l.b16 %v766
        %v803 = vunpack.c.l.b16 %v767
        %v804 = vunpack.c.l.b16 %v768
        %v805 = vunpack.c.l.b16 %v769
        %v806 = vunpack.c.l.b16 %v770
        %v807 = vunpack.c.l.b16 %v771
        %v808 = vunpack.c.l.b16 %v772
        %v809 = vunpack.c.l.b16 %v773
        %v810 = vunpack.c.l.b16 %v774
        %v811 = vunpack.c.l.b16 %v775
        %v812 = vunpack.c.l.b16 %v776
        %v813 = vunpack.c.l.b16 %v777
        %v814 = vunpack.c.l.b16 %v778
        %v815 = vunpack.c.l.b16 %v779
        %v816 = vpack.c.b16 %v801, %v800
        %v817 = vpack.c.b16 %v803, %v802
        %v818 = vpack.c.b16 %v805, %v804
        %v819 = vpack.c.b16 %v807, %v806
        %v820 = vpack.c.b16 %v809, %v808
        %v821 = vpack.c.b16 %v811, %v810
        %v822 = vpack.c.b16 %v813, %v812
        %v823 = vpack.c.b16 %v815, %v814
        %832 = vmatprep.subr.bf16.mxu0 0
        %833 = vmatpush1.bf16.msra.mxu0 %v816
        %834 = vmatprep.subr.bf16.mxu0 0
        %835 = vmatpush1.bf16.msra.mxu0 %v817
        %836 = vmatprep.subr.bf16.mxu0 0
        %837 = vmatpush1.bf16.msra.mxu0 %v818
        %838 = vmatprep.subr.bf16.mxu0 0
        %839 = vmatpush1.bf16.msra.mxu0 %v819
        %840 = vmatprep.subr.bf16.mxu0 0
        %841 = vmatpush1.bf16.msra.mxu0 %v820
        %842 = vmatprep.subr.bf16.mxu0 0
        %843 = vmatpush1.bf16.msra.mxu0 %v821
        %844 = vmatprep.subr.bf16.mxu0 0
        %845 = vmatpush1.bf16.msra.mxu0 %v822
        %846 = vmatprep.subr.bf16.mxu0 0
        %847 = vmatpush1.bf16.msra.mxu0 %v823
        %848 = vmatprep.subr.bf16.mxu0 0
        %849 = vmatpush1.bf16.msra.mxu0 0
        %850 = vmatprep.subr.bf16.mxu0 0
        %851 = vmatpush1.bf16.msra.mxu0 0
        %852 = vmatprep.subr.bf16.mxu0 0
        %853 = vmatpush1.bf16.msra.mxu0 0
        %854 = vmatprep.subr.bf16.mxu0 0
        %855 = vmatpush1.bf16.msra.mxu0 0
        %856 = vmatprep.subr.bf16.mxu0 0
        %857 = vmatpush1.bf16.msra.mxu0 0
        %858 = vmatprep.subr.bf16.mxu0 0
        %859 = vmatpush1.bf16.msra.mxu0 0
        %860 = vmatprep.subr.bf16.mxu0 0
        %861 = vmatpush1.bf16.msra.mxu0 0
        %862 = vmatprep.subr.bf16.mxu0 0
        %863 = vmatpush1.bf16.msra.mxu0 0
        %864 = vmatprep.mubr.bf16.mxu0 0
        %865 = vmatmul.mubr.bf16.gmra.mrb[0].mxu0 %v535
        %v866 = vpop.f32.mrb[0].mxu0
        %v867 = vadd.f32 %v783, %v866
        %v868 = vpop.f32.mrb[0].mxu0
        %v869 = vpop.f32.mrb[0].mxu0
        %v870 = vadd.f32 %v783, %v869
        %v871 = vpop.f32.mrb[0].mxu0
        %872 = vdwg.mxu0
        %v873 = vpack.c.bf16 %v648, %v645
        %v874 = vpack.c.bf16 %v759, %v756
        %v875 = vpack.c.bf16 %v870, %v867
        %vm876 = vcmask 261120
        %v878 = vsel %vm876, %v873, 0
        %v881 = vsel %vm876, %v874, 0
        %883 = vmatprep.subr.bf16.mxu0 0
        %884 = vmatpush1.bf16.xpose.msra.mxu0 %v881
        %885 = vmatprep.subr.bf16.mxu0 0
        %886 = vmatpush1.bf16.xpose.msra.mxu0 0
        %887 = vmatprep.subr.bf16.mxu0 0
        %888 = vmatpush1.bf16.xpose.msra.mxu0 0
        %889 = vmatprep.subr.bf16.mxu0 0
        %890 = vmatpush1.bf16.xpose.msra.mxu0 0
        %891 = vmatprep.subr.bf16.mxu0 0
        %892 = vmatpush1.bf16.xpose.msra.mxu0 0
        %893 = vmatprep.subr.bf16.mxu0 0
        %894 = vmatpush1.bf16.xpose.msra.mxu0 0
        %895 = vmatprep.subr.bf16.mxu0 0
        %896 = vmatpush1.bf16.xpose.msra.mxu0 0
        %897 = vmatprep.subr.bf16.mxu0 0
        %898 = vmatpush1.bf16.xpose.msra.mxu0 0
        %899 = vmatprep.subr.bf16.mxu0 0
        %900 = vmatpush1.bf16.xpose.msra.mxu0 0
        %901 = vmatprep.subr.bf16.mxu0 0
        %902 = vmatpush1.bf16.xpose.msra.mxu0 0
        %903 = vmatprep.subr.bf16.mxu0 0
        %904 = vmatpush1.bf16.xpose.msra.mxu0 0
        %905 = vmatprep.subr.bf16.mxu0 0
        %906 = vmatpush1.bf16.xpose.msra.mxu0 0
        %907 = vmatprep.subr.bf16.mxu0 0
        %908 = vmatpush1.bf16.xpose.msra.mxu0 0
        %909 = vmatprep.subr.bf16.mxu0 0
        %910 = vmatpush1.bf16.xpose.msra.mxu0 0
        %911 = vmatprep.subr.bf16.mxu0 0
        %912 = vmatpush1.bf16.xpose.msra.mxu0 0
        %913 = vmatprep.subr.bf16.mxu0 0
        %914 = vmatpush1.bf16.xpose.msra.mxu0 0
        %915 = vmatprep.mubr.bf16.mxu0 0
        %916 = vmatmul.mubr.bf16.gmra.mrb[0].mxu0 %v878
        %v917 = vpop.f32.mrb[0].mxu0
        %v918 = vadd.f32 0.0, %v917
        %v919 = vpop.f32.mrb[0].mxu0
        %v920 = vpop.f32.mrb[0].mxu0
        %v921 = vadd.f32 0.0, %v920
        %v922 = vpop.f32.mrb[0].mxu0
        %923 = vdwg.mxu0
        %vm924 = vcmask 130048
        %v925 = vsel %vm924, %v918, -inf
        %926 = vmax.xlane.f32.xlu0 %v925
        %v927 = vpop.xlane.xlu0 %926
        %v928 = vsel %vm924, %v921, -inf
        %929 = vmax.xlane.f32.xlu0 %v928
        %v930 = vpop.xlane.xlu0 %929
        %v931 = vsub.f32 %v918, %v927
        %v932 = vsub.f32 %v921, %v930
        %v933 = vmul.f32 %v931, 1.442695
        %v934 = vpow.pop %v933
        %v935 = vmul.f32 %v932, 1.442695
        %v936 = vpow.pop %v935
        %v937 = vsel %vm924, %v934, 0.0
        %938 = vadd.xlane.f32.xlu0 %v937
        %v939 = vpop.xlane.xlu0 %938
        %v940 = vsel %vm924, %v936, 0.0
        %941 = vadd.xlane.f32.xlu0 %v940
        %v942 = vpop.xlane.xlu0 %941
        %v943 = vrcp.pop %v939
        %v944 = vrcp.pop %v942
        %v945 = vmul.f32 %v934, %v943
        %v946 = vmul.f32 %v936, %v944
        %v947 = vpack.c.bf16 %v946, %v945
        %v949 = vsel %vm924, %v947, 0
        %951 = vmatprep.subr.bf16.mxu0 0
        %952 = vmatpush1.bf16.msra.mxu0 %v875
        %953 = vmatprep.subr.bf16.mxu0 0
        %954 = vmatpush1.bf16.msra.mxu0 0
        %955 = vmatprep.subr.bf16.mxu0 0
        %956 = vmatpush1.bf16.msra.mxu0 0
        %957 = vmatprep.subr.bf16.mxu0 0
        %958 = vmatpush1.bf16.msra.mxu0 0
        %959 = vmatprep.subr.bf16.mxu0 0
        %960 = vmatpush1.bf16.msra.mxu0 0
        %961 = vmatprep.subr.bf16.mxu0 0
        %962 = vmatpush1.bf16.msra.mxu0 0
        %963 = vmatprep.subr.bf16.mxu0 0
        %964 = vmatpush1.bf16.msra.mxu0 0
        %965 = vmatprep.subr.bf16.mxu0 0
        %966 = vmatpush1.bf16.msra.mxu0 0
        %967 = vmatprep.subr.bf16.mxu0 0
        %968 = vmatpush1.bf16.msra.mxu0 0
        %969 = vmatprep.subr.bf16.mxu0 0
        %970 = vmatpush1.bf16.msra.mxu0 0
        %971 = vmatprep.subr.bf16.mxu0 0
        %972 = vmatpush1.bf16.msra.mxu0 0
        %973 = vmatprep.subr.bf16.mxu0 0
        %974 = vmatpush1.bf16.msra.mxu0 0
        %975 = vmatprep.subr.bf16.mxu0 0
        %976 = vmatpush1.bf16.msra.mxu0 0
        %977 = vmatprep.subr.bf16.mxu0 0
        %978 = vmatpush1.bf16.msra.mxu0 0
        %979 = vmatprep.subr.bf16.mxu0 0
        %980 = vmatpush1.bf16.msra.mxu0 0
        %981 = vmatprep.subr.bf16.mxu0 0
        %982 = vmatpush1.bf16.msra.mxu0 0
        %983 = vmatprep.mubr.bf16.mxu0 0
        %984 = vmatmul.mubr.bf16.gmra.mrb[0].mxu0 %v949
        %v985 = vpop.f32.mrb[0].mxu0
        %v986 = vadd.f32 0.0, %v985
        %v987 = vpop.f32.mrb[0].mxu0
        %v988 = vpop.f32.mrb[0].mxu0
        %v989 = vadd.f32 0.0, %v988
        %v990 = vpop.f32.mrb[0].mxu0
        %991 = vdwg.mxu0
        %v992 = vpack.c.bf16 %v989, %v986
        %993 = vst.msk [vmem:[#allocation4] sm:$0xff] %vm876, %v992
        %995 = vrot.lane.b32.xlu0 %v873, 96
        %v996 = vpop.permute.xlu0 %995
        %998 = vrot.lane.b32.xlu0 %v874, 96
        %v999 = vpop.permute.xlu0 %998
        %v1001 = vsel %vm876, %v996, 0
        %v1004 = vsel %vm876, %v999, 0
        %1006 = vmatprep.subr.bf16.mxu0 0
        %1007 = vmatpush1.bf16.xpose.msra.mxu0 %v1004
        %1008 = vmatprep.subr.bf16.mxu0 0
        %1009 = vmatpush1.bf16.xpose.msra.mxu0 0
        %1010 = vmatprep.subr.bf16.mxu0 0
        %1011 = vmatpush1.bf16.xpose.msra.mxu0 0
        %1012 = vmatprep.subr.bf16.mxu0 0
        %1013 = vmatpush1.bf16.xpose.msra.mxu0 0
        %1014 = vmatprep.subr.bf16.mxu0 0
        %1015 = vmatpush1.bf16.xpose.msra.mxu0 0
        %1016 = vmatprep.subr.bf16.mxu0 0
        %1017 = vmatpush1.bf16.xpose.msra.mxu0 0
        %1018 = vmatprep.subr.bf16.mxu0 0
        %1019 = vmatpush1.bf16.xpose.msra.mxu0 0
        %1020 = vmatprep.subr.bf16.mxu0 0
        %1021 = vmatpush1.bf16.xpose.msra.mxu0 0
        %1022 = vmatprep.subr.bf16.mxu0 0
        %1023 = vmatpush1.bf16.xpose.msra.mxu0 0
        %1024 = vmatprep.subr.bf16.mxu0 0
        %1025 = vmatpush1.bf16.xpose.msra.mxu0 0
        %1026 = vmatprep.subr.bf16.mxu0 0
        %1027 = vmatpush1.bf16.xpose.msra.mxu0 0
        %1028 = vmatprep.subr.bf16.mxu0 0
        %1029 = vmatpush1.bf16.xpose.msra.mxu0 0
        %1030 = vmatprep.subr.bf16.mxu0 0
        %1031 = vmatpush1.bf16.xpose.msra.mxu0 0
        %1032 = vmatprep.subr.bf16.mxu0 0
        %1033 = vmatpush1.bf16.xpose.msra.mxu0 0
        %1034 = vmatprep.subr.bf16.mxu0 0
        %1035 = vmatpush1.bf16.xpose.msra.mxu0 0
        %1036 = vmatprep.subr.bf16.mxu0 0
        %1037 = vmatpush1.bf16.xpose.msra.mxu0 0
        %1038 = vmatprep.mubr.bf16.mxu0 0
        %1039 = vmatmul.mubr.bf16.gmra.mrb[0].mxu0 %v1001
        %v1040 = vpop.f32.mrb[0].mxu0
        %v1041 = vadd.f32 0.0, %v1040
        %v1042 = vpop.f32.mrb[0].mxu0
        %v1043 = vpop.f32.mrb[0].mxu0
        %v1044 = vadd.f32 0.0, %v1043
        %v1045 = vpop.f32.mrb[0].mxu0
        %1046 = vdwg.mxu0
        %v1047 = vsel %vm924, %v1041, -inf
        %1048 = vmax.xlane.f32.xlu0 %v1047
        %v1049 = vpop.xlane.xlu0 %1048
        %v1050 = vsel %vm924, %v1044, -inf
        %1051 = vmax.xlane.f32.xlu0 %v1050
        %v1052 = vpop.xlane.xlu0 %1051
        %v1053 = vsub.f32 %v1041, %v1049
        %v1054 = vsub.f32 %v1044, %v1052
        %v1055 = vmul.f32 %v1053, 1.442695
        %v1056 = vpow.pop %v1055
        %v1057 = vmul.f32 %v1054, 1.442695
        %v1058 = vpow.pop %v1057
        %v1059 = vsel %vm924, %v1056, 0.0
        %1060 = vadd.xlane.f32.xlu0 %v1059
        %v1061 = vpop.xlane.xlu0 %1060
        %v1062 = vsel %vm924, %v1058, 0.0
        %1063 = vadd.xlane.f32.xlu0 %v1062
        %v1064 = vpop.xlane.xlu0 %1063
        %v1065 = vrcp.pop %v1061
        %v1066 = vrcp.pop %v1064
        %v1067 = vmul.f32 %v1056, %v1065
        %v1068 = vmul.f32 %v1058, %v1066
        %v1069 = vpack.c.bf16 %v1068, %v1067
        %1071 = vrot.lane.b32.xlu0 %v875, 96
        %v1072 = vpop.permute.xlu0 %1071
        %v1075 = vsel %vm924, %v1069, 0
        %1077 = vmatprep.subr.bf16.mxu0 0
        %1078 = vmatpush1.bf16.msra.mxu0 %v1072
        %1079 = vmatprep.subr.bf16.mxu0 0
        %1080 = vmatpush1.bf16.msra.mxu0 0
        %1081 = vmatprep.subr.bf16.mxu0 0
        %1082 = vmatpush1.bf16.msra.mxu0 0
        %1083 = vmatprep.subr.bf16.mxu0 0
        %1084 = vmatpush1.bf16.msra.mxu0 0
        %1085 = vmatprep.subr.bf16.mxu0 0
        %1086 = vmatpush1.bf16.msra.mxu0 0
        %1087 = vmatprep.subr.bf16.mxu0 0
        %1088 = vmatpush1.bf16.msra.mxu0 0
        %1089 = vmatprep.subr.bf16.mxu0 0
        %1090 = vmatpush1.bf16.msra.mxu0 0
        %1091 = vmatprep.subr.bf16.mxu0 0
        %1092 = vmatpush1.bf16.msra.mxu0 0
        %1093 = vmatprep.subr.bf16.mxu0 0
        %1094 = vmatpush1.bf16.msra.mxu0 0
        %1095 = vmatprep.subr.bf16.mxu0 0
        %1096 = vmatpush1.bf16.msra.mxu0 0
        %1097 = vmatprep.subr.bf16.mxu0 0
        %1098 = vmatpush1.bf16.msra.mxu0 0
        %1099 = vmatprep.subr.bf16.mxu0 0
        %1100 = vmatpush1.bf16.msra.mxu0 0
        %1101 = vmatprep.subr.bf16.mxu0 0
        %1102 = vmatpush1.bf16.msra.mxu0 0
        %1103 = vmatprep.subr.bf16.mxu0 0
        %1104 = vmatpush1.bf16.msra.mxu0 0
        %1105 = vmatprep.subr.bf16.mxu0 0
        %1106 = vmatpush1.bf16.msra.mxu0 0
        %1107 = vmatprep.subr.bf16.mxu0 0
        %1108 = vmatpush1.bf16.msra.mxu0 0
        %1109 = vmatprep.mubr.bf16.mxu0 0
        %1110 = vmatmul.mubr.bf16.gmra.mrb[0].mxu0 %v1075
        %v1111 = vpop.f32.mrb[0].mxu0
        %v1112 = vadd.f32 0.0, %v1111
        %v1113 = vpop.f32.mrb[0].mxu0
        %v1114 = vpop.f32.mrb[0].mxu0
        %v1115 = vadd.f32 0.0, %v1114
        %v1116 = vpop.f32.mrb[0].mxu0
        %1117 = vdwg.mxu0
        %v1118 = vpack.c.bf16 %v1115, %v1112
        %1120 = vrot.lane.b32.xlu0 %v1118, 32
        %v1121 = vpop.permute.xlu0 %1120
        %vm1123 = vcmask 523520
        %1124 = vst.msk [vmem:[#allocation4] sm:$0xff] %vm1123, %v1121
        %1125 = vrot.lane.b32.xlu0 %v873, 64
        %v1126 = vpop.permute.xlu0 %1125
        %1127 = vrot.lane.b32.xlu0 %v874, 64
        %v1128 = vpop.permute.xlu0 %1127
        %v1130 = vsel %vm876, %v1126, 0
        %v1133 = vsel %vm876, %v1128, 0
        %1135 = vmatprep.subr.bf16.mxu0 0
        %1136 = vmatpush1.bf16.xpose.msra.mxu0 %v1133
        %1137 = vmatprep.subr.bf16.mxu0 0
        %1138 = vmatpush1.bf16.xpose.msra.mxu0 0
        %1139 = vmatprep.subr.bf16.mxu0 0
        %1140 = vmatpush1.bf16.xpose.msra.mxu0 0
        %1141 = vmatprep.subr.bf16.mxu0 0
        %1142 = vmatpush1.bf16.xpose.msra.mxu0 0
        %1143 = vmatprep.subr.bf16.mxu0 0
        %1144 = vmatpush1.bf16.xpose.msra.mxu0 0
        %1145 = vmatprep.subr.bf16.mxu0 0
        %1146 = vmatpush1.bf16.xpose.msra.mxu0 0
        %1147 = vmatprep.subr.bf16.mxu0 0
        %1148 = vmatpush1.bf16.xpose.msra.mxu0 0
        %1149 = vmatprep.subr.bf16.mxu0 0
        %1150 = vmatpush1.bf16.xpose.msra.mxu0 0
        %1151 = vmatprep.subr.bf16.mxu0 0
        %1152 = vmatpush1.bf16.xpose.msra.mxu0 0
        %1153 = vmatprep.subr.bf16.mxu0 0
        %1154 = vmatpush1.bf16.xpose.msra.mxu0 0
        %1155 = vmatprep.subr.bf16.mxu0 0
        %1156 = vmatpush1.bf16.xpose.msra.mxu0 0
        %1157 = vmatprep.subr.bf16.mxu0 0
        %1158 = vmatpush1.bf16.xpose.msra.mxu0 0
        %1159 = vmatprep.subr.bf16.mxu0 0
        %1160 = vmatpush1.bf16.xpose.msra.mxu0 0
        %1161 = vmatprep.subr.bf16.mxu0 0
        %1162 = vmatpush1.bf16.xpose.msra.mxu0 0
        %1163 = vmatprep.subr.bf16.mxu0 0
        %1164 = vmatpush1.bf16.xpose.msra.mxu0 0
        %1165 = vmatprep.subr.bf16.mxu0 0
        %1166 = vmatpush1.bf16.xpose.msra.mxu0 0
        %1167 = vmatprep.mubr.bf16.mxu0 0
        %1168 = vmatmul.mubr.bf16.gmra.mrb[0].mxu0 %v1130
        %v1169 = vpop.f32.mrb[0].mxu0
        %v1170 = vadd.f32 0.0, %v1169
        %v1171 = vpop.f32.mrb[0].mxu0
        %v1172 = vpop.f32.mrb[0].mxu0
        %v1173 = vadd.f32 0.0, %v1172
        %v1174 = vpop.f32.mrb[0].mxu0
        %1175 = vdwg.mxu0
        %v1176 = vsel %vm924, %v1170, -inf
        %1177 = vmax.xlane.f32.xlu0 %v1176
        %v1178 = vpop.xlane.xlu0 %1177
        %v1179 = vsel %vm924, %v1173, -inf
        %1180 = vmax.xlane.f32.xlu0 %v1179
        %v1181 = vpop.xlane.xlu0 %1180
        %v1182 = vsub.f32 %v1170, %v1178
        %v1183 = vsub.f32 %v1173, %v1181
        %v1184 = vmul.f32 %v1182, 1.442695
        %v1185 = vpow.pop %v1184
        %v1186 = vmul.f32 %v1183, 1.442695
        %v1187 = vpow.pop %v1186
        %v1188 = vsel %vm924, %v1185, 0.0
        %1189 = vadd.xlane.f32.xlu0 %v1188
        %v1190 = vpop.xlane.xlu0 %1189
        %v1191 = vsel %vm924, %v1187, 0.0
        %1192 = vadd.xlane.f32.xlu0 %v1191
        %v1193 = vpop.xlane.xlu0 %1192
        %v1194 = vrcp.pop %v1190
        %v1195 = vrcp.pop %v1193
        %v1196 = vmul.f32 %v1185, %v1194
        %v1197 = vmul.f32 %v1187, %v1195
        %v1198 = vpack.c.bf16 %v1197, %v1196
        %1199 = vrot.lane.b32.xlu0 %v875, 64
        %v1200 = vpop.permute.xlu0 %1199
        %v1203 = vsel %vm924, %v1198, 0
        %1205 = vmatprep.subr.bf16.mxu0 0
        %1206 = vmatpush1.bf16.msra.mxu0 %v1200
        %1207 = vmatprep.subr.bf16.mxu0 0
        %1208 = vmatpush1.bf16.msra.mxu0 0
        %1209 = vmatprep.subr.bf16.mxu0 0
        %1210 = vmatpush1.bf16.msra.mxu0 0
        %1211 = vmatprep.subr.bf16.mxu0 0
        %1212 = vmatpush1.bf16.msra.mxu0 0
        %1213 = vmatprep.subr.bf16.mxu0 0
        %1214 = vmatpush1.bf16.msra.mxu0 0
        %1215 = vmatprep.subr.bf16.mxu0 0
        %1216 = vmatpush1.bf16.msra.mxu0 0
        %1217 = vmatprep.subr.bf16.mxu0 0
        %1218 = vmatpush1.bf16.msra.mxu0 0
        %1219 = vmatprep.subr.bf16.mxu0 0
        %1220 = vmatpush1.bf16.msra.mxu0 0
        %1221 = vmatprep.subr.bf16.mxu0 0
        %1222 = vmatpush1.bf16.msra.mxu0 0
        %1223 = vmatprep.subr.bf16.mxu0 0
        %1224 = vmatpush1.bf16.msra.mxu0 0
        %1225 = vmatprep.subr.bf16.mxu0 0
        %1226 = vmatpush1.bf16.msra.mxu0 0
        %1227 = vmatprep.subr.bf16.mxu0 0
        %1228 = vmatpush1.bf16.msra.mxu0 0
        %1229 = vmatprep.subr.bf16.mxu0 0
        %1230 = vmatpush1.bf16.msra.mxu0 0
        %1231 = vmatprep.subr.bf16.mxu0 0
        %1232 = vmatpush1.bf16.msra.mxu0 0
        %1233 = vmatprep.subr.bf16.mxu0 0
        %1234 = vmatpush1.bf16.msra.mxu0 0
        %1235 = vmatprep.subr.bf16.mxu0 0
        %1236 = vmatpush1.bf16.msra.mxu0 0
        %1237 = vmatprep.mubr.bf16.mxu0 0
        %1238 = vmatmul.mubr.bf16.gmra.mrb[0].mxu0 %v1203
        %v1239 = vpop.f32.mrb[0].mxu0
        %v1240 = vadd.f32 0.0, %v1239
        %v1241 = vpop.f32.mrb[0].mxu0
        %v1242 = vpop.f32.mrb[0].mxu0
        %v1243 = vadd.f32 0.0, %v1242
        %v1244 = vpop.f32.mrb[0].mxu0
        %1245 = vdwg.mxu0
        %v1246 = vpack.c.bf16 %v1243, %v1240
        %1248 = vrot.lane.b32.xlu0 %v1246, 64
        %v1249 = vpop.permute.xlu0 %1248
        %vm1251 = vcmask 785920
        %1252 = vst.msk [vmem:[#allocation4] sm:$0xff] %vm1251, %v1249
        %1253 = vrot.lane.b32.xlu0 %v873, 32
        %v1254 = vpop.permute.xlu0 %1253
        %1255 = vrot.lane.b32.xlu0 %v874, 32
        %v1256 = vpop.permute.xlu0 %1255
        %v1258 = vsel %vm876, %v1254, 0
        %v1261 = vsel %vm876, %v1256, 0
        %1263 = vmatprep.subr.bf16.mxu0 0
        %1264 = vmatpush1.bf16.xpose.msra.mxu0 %v1261
        %1265 = vmatprep.subr.bf16.mxu0 0
        %1266 = vmatpush1.bf16.xpose.msra.mxu0 0
        %1267 = vmatprep.subr.bf16.mxu0 0
        %1268 = vmatpush1.bf16.xpose.msra.mxu0 0
        %1269 = vmatprep.subr.bf16.mxu0 0
        %1270 = vmatpush1.bf16.xpose.msra.mxu0 0
        %1271 = vmatprep.subr.bf16.mxu0 0
        %1272 = vmatpush1.bf16.xpose.msra.mxu0 0
        %1273 = vmatprep.subr.bf16.mxu0 0
        %1274 = vmatpush1.bf16.xpose.msra.mxu0 0
        %1275 = vmatprep.subr.bf16.mxu0 0
        %1276 = vmatpush1.bf16.xpose.msra.mxu0 0
        %1277 = vmatprep.subr.bf16.mxu0 0
        %1278 = vmatpush1.bf16.xpose.msra.mxu0 0
        %1279 = vmatprep.subr.bf16.mxu0 0
        %1280 = vmatpush1.bf16.xpose.msra.mxu0 0
        %1281 = vmatprep.subr.bf16.mxu0 0
        %1282 = vmatpush1.bf16.xpose.msra.mxu0 0
        %1283 = vmatprep.subr.bf16.mxu0 0
        %1284 = vmatpush1.bf16.xpose.msra.mxu0 0
        %1285 = vmatprep.subr.bf16.mxu0 0
        %1286 = vmatpush1.bf16.xpose.msra.mxu0 0
        %1287 = vmatprep.subr.bf16.mxu0 0
        %1288 = vmatpush1.bf16.xpose.msra.mxu0 0
        %1289 = vmatprep.subr.bf16.mxu0 0
        %1290 = vmatpush1.bf16.xpose.msra.mxu0 0
        %1291 = vmatprep.subr.bf16.mxu0 0
        %1292 = vmatpush1.bf16.xpose.msra.mxu0 0
        %1293 = vmatprep.subr.bf16.mxu0 0
        %1294 = vmatpush1.bf16.xpose.msra.mxu0 0
        %1295 = vmatprep.mubr.bf16.mxu0 0
        %1296 = vmatmul.mubr.bf16.gmra.mrb[0].mxu0 %v1258
        %v1297 = vpop.f32.mrb[0].mxu0
        %v1298 = vadd.f32 0.0, %v1297
        %v1299 = vpop.f32.mrb[0].mxu0
        %v1300 = vpop.f32.mrb[0].mxu0
        %v1301 = vadd.f32 0.0, %v1300
        %v1302 = vpop.f32.mrb[0].mxu0
        %1303 = vdwg.mxu0
        %v1304 = vsel %vm924, %v1298, -inf
        %1305 = vmax.xlane.f32.xlu0 %v1304
        %v1306 = vpop.xlane.xlu0 %1305
        %v1307 = vsel %vm924, %v1301, -inf
        %1308 = vmax.xlane.f32.xlu0 %v1307
        %v1309 = vpop.xlane.xlu0 %1308
        %v1310 = vsub.f32 %v1298, %v1306
        %v1311 = vsub.f32 %v1301, %v1309
        %v1312 = vmul.f32 %v1310, 1.442695
        %v1313 = vpow.pop %v1312
        %v1314 = vmul.f32 %v1311, 1.442695
        %v1315 = vpow.pop %v1314
        %v1316 = vsel %vm924, %v1313, 0.0
        %1317 = vadd.xlane.f32.xlu0 %v1316
        %v1318 = vpop.xlane.xlu0 %1317
        %v1319 = vsel %vm924, %v1315, 0.0
        %1320 = vadd.xlane.f32.xlu0 %v1319
        %v1321 = vpop.xlane.xlu0 %1320
        %v1322 = vrcp.pop %v1318
        %v1323 = vrcp.pop %v1321
        %v1324 = vmul.f32 %v1313, %v1322
        %v1325 = vmul.f32 %v1315, %v1323
        %v1326 = vpack.c.bf16 %v1325, %v1324
        %1327 = vrot.lane.b32.xlu0 %v875, 32
        %v1328 = vpop.permute.xlu0 %1327
        %v1331 = vsel %vm924, %v1326, 0
        %1333 = vmatprep.subr.bf16.mxu0 0
        %1334 = vmatpush1.bf16.msra.mxu0 %v1328
        %1335 = vmatprep.subr.bf16.mxu0 0
        %1336 = vmatpush1.bf16.msra.mxu0 0
        %1337 = vmatprep.subr.bf16.mxu0 0
        %1338 = vmatpush1.bf16.msra.mxu0 0
        %1339 = vmatprep.subr.bf16.mxu0 0
        %1340 = vmatpush1.bf16.msra.mxu0 0
        %1341 = vmatprep.subr.bf16.mxu0 0
        %1342 = vmatpush1.bf16.msra.mxu0 0
        %1343 = vmatprep.subr.bf16.mxu0 0
        %1344 = vmatpush1.bf16.msra.mxu0 0
        %1345 = vmatprep.subr.bf16.mxu0 0
        %1346 = vmatpush1.bf16.msra.mxu0 0
        %1347 = vmatprep.subr.bf16.mxu0 0
        %1348 = vmatpush1.bf16.msra.mxu0 0
        %1349 = vmatprep.subr.bf16.mxu0 0
        %1350 = vmatpush1.bf16.msra.mxu0 0
        %1351 = vmatprep.subr.bf16.mxu0 0
        %1352 = vmatpush1.bf16.msra.mxu0 0
        %1353 = vmatprep.subr.bf16.mxu0 0
        %1354 = vmatpush1.bf16.msra.mxu0 0
        %1355 = vmatprep.subr.bf16.mxu0 0
        %1356 = vmatpush1.bf16.msra.mxu0 0
        %1357 = vmatprep.subr.bf16.mxu0 0
        %1358 = vmatpush1.bf16.msra.mxu0 0
        %1359 = vmatprep.subr.bf16.mxu0 0
        %1360 = vmatpush1.bf16.msra.mxu0 0
        %1361 = vmatprep.subr.bf16.mxu0 0
        %1362 = vmatpush1.bf16.msra.mxu0 0
        %1363 = vmatprep.subr.bf16.mxu0 0
        %1364 = vmatpush1.bf16.msra.mxu0 0
        %1365 = vmatprep.mubr.bf16.mxu0 0
        %1366 = vmatmul.mubr.bf16.gmra.mrb[0].mxu0 %v1331
        %v1367 = vpop.f32.mrb[0].mxu0
        %v1368 = vadd.f32 0.0, %v1367
        %v1369 = vpop.f32.mrb[0].mxu0
        %v1370 = vpop.f32.mrb[0].mxu0
        %v1371 = vadd.f32 0.0, %v1370
        %v1372 = vpop.f32.mrb[0].mxu0
        %1373 = vdwg.mxu0
        %v1374 = vpack.c.bf16 %v1371, %v1368
        %1376 = vrot.lane.b32.xlu0 %v1374, 96
        %v1377 = vpop.permute.xlu0 %1376
        %vm1379 = vcmask 1048320
        %1380 = vst.msk [vmem:[#allocation4] sm:$0xff] %vm1379, %v1377
        %v1381 = vld [vmem:[#allocation3] sm:$0xff]
        %v1382 = vld [vmem:[#allocation3 + $0x8] sm:$0xff]
        %v1383 = vld [vmem:[#allocation4] sm:$0xff]
        %s1384 = smul.addr %s539, 4
        %s1385 = scalar_lea.vmem [#allocation13], %s1384
        %v1386 = vld [vmem:[%s1385] sm:$0xf]
        %v1387 = vld [vmem:[%s1385 + $0x4] sm:$0xf]
        %v1388 = vld [vmem:[%s1385 + $0x8] sm:$0xf]
        %v1389 = vld [vmem:[%s1385 + $0xc] sm:$0xf]
        %v1390 = vld [vmem:[%s1385 + $0x10] sm:$0xf]
        %v1391 = vld [vmem:[%s1385 + $0x14] sm:$0xf]
        %v1392 = vld [vmem:[%s1385 + $0x18] sm:$0xf]
        %v1393 = vld [vmem:[%s1385 + $0x1c] sm:$0xf]
        %v1394 = vld [vmem:[%s1385 + $0x20] sm:$0xf]
        %v1395 = vld [vmem:[%s1385 + $0x24] sm:$0xf]
        %v1396 = vld [vmem:[%s1385 + $0x28] sm:$0xf]
        %v1397 = vld [vmem:[%s1385 + $0x2c] sm:$0xf]
        %v1398 = vld [vmem:[%s1385 + $0x30] sm:$0xf]
        %v1399 = vld [vmem:[%s1385 + $0x34] sm:$0xf]
        %v1400 = vld [vmem:[%s1385 + $0x38] sm:$0xf]
        %v1401 = vld [vmem:[%s1385 + $0x3c] sm:$0xf]
        %v1418 = vunpack.c.l.b16 %v1386
        %v1419 = vunpack.c.l.b16 %v1387
        %v1420 = vunpack.c.l.b16 %v1388
        %v1421 = vunpack.c.l.b16 %v1389
        %v1422 = vunpack.c.l.b16 %v1390
        %v1423 = vunpack.c.l.b16 %v1391
        %v1424 = vunpack.c.l.b16 %v1392
        %v1425 = vunpack.c.l.b16 %v1393
        %v1426 = vunpack.c.l.b16 %v1394
        %v1427 = vunpack.c.l.b16 %v1395
        %v1428 = vunpack.c.l.b16 %v1396
        %v1429 = vunpack.c.l.b16 %v1397
        %v1430 = vunpack.c.l.b16 %v1398
        %v1431 = vunpack.c.l.b16 %v1399
        %v1432 = vunpack.c.l.b16 %v1400
        %v1433 = vunpack.c.l.b16 %v1401
        %v1434 = vpack.c.b16 %v1419, %v1418
        %v1435 = vpack.c.b16 %v1421, %v1420
        %v1436 = vpack.c.b16 %v1423, %v1422
        %v1437 = vpack.c.b16 %v1425, %v1424
        %v1438 = vpack.c.b16 %v1427, %v1426
        %v1439 = vpack.c.b16 %v1429, %v1428
        %v1440 = vpack.c.b16 %v1431, %v1430
        %v1441 = vpack.c.b16 %v1433, %v1432
        %1450 = vmatprep.subr.bf16.mxu0 0
        %1451 = vmatpush1.bf16.msra.mxu0 %v1434
        %1452 = vmatprep.subr.bf16.mxu0 0
        %1453 = vmatpush1.bf16.msra.mxu0 %v1435
        %1454 = vmatprep.subr.bf16.mxu0 0
        %1455 = vmatpush1.bf16.msra.mxu0 %v1436
        %1456 = vmatprep.subr.bf16.mxu0 0
        %1457 = vmatpush1.bf16.msra.mxu0 %v1437
        %1458 = vmatprep.subr.bf16.mxu0 0
        %1459 = vmatpush1.bf16.msra.mxu0 %v1438
        %1460 = vmatprep.subr.bf16.mxu0 0
        %1461 = vmatpush1.bf16.msra.mxu0 %v1439
        %1462 = vmatprep.subr.bf16.mxu0 0
        %1463 = vmatpush1.bf16.msra.mxu0 %v1440
        %1464 = vmatprep.subr.bf16.mxu0 0
        %1465 = vmatpush1.bf16.msra.mxu0 %v1441
        %1466 = vmatprep.subr.bf16.mxu0 0
        %1467 = vmatpush1.bf16.msra.mxu0 0
        %1468 = vmatprep.subr.bf16.mxu0 0
        %1469 = vmatpush1.bf16.msra.mxu0 0
        %1470 = vmatprep.subr.bf16.mxu0 0
        %1471 = vmatpush1.bf16.msra.mxu0 0
        %1472 = vmatprep.subr.bf16.mxu0 0
        %1473 = vmatpush1.bf16.msra.mxu0 0
        %1474 = vmatprep.subr.bf16.mxu0 0
        %1475 = vmatpush1.bf16.msra.mxu0 0
        %1476 = vmatprep.subr.bf16.mxu0 0
        %1477 = vmatpush1.bf16.msra.mxu0 0
        %1478 = vmatprep.subr.bf16.mxu0 0
        %1479 = vmatpush1.bf16.msra.mxu0 0
        %1480 = vmatprep.subr.bf16.mxu0 0
        %1481 = vmatpush1.bf16.msra.mxu0 0
        %1482 = vmatprep.mubr.bf16.mxu0 0
        %1483 = vmatmul.mubr.bf16.gmra.mrb[0].mxu0 %v1383
        %v1484 = vpop.f32.mrb[0].mxu0
        %v1485 = vadd.f32 0.0, %v1484
        %v1486 = vpop.f32.mrb[0].mxu0
        %v1487 = vpop.f32.mrb[0].mxu0
        %v1488 = vadd.f32 0.0, %v1487
        %v1489 = vpop.f32.mrb[0].mxu0
        %1490 = vdwg.mxu0
        %v1491 = vadd.f32 %v1381, %v1485
        %v1492 = vadd.f32 %v1382, %v1488
        %1493 = vst [vmem:[#allocation3] sm:$0xff] %v1491
        %1494 = vst [vmem:[#allocation3 + $0x8] sm:$0xff] %v1492
        // Predicated region
        $region93: #{tpu_custom_call.1} parent=59 // pred_check
          %p1495 = pneg %p484
        $region94: #{tpu_custom_call.1} parent=59 // pred_check_branch
          %1497 = sbr.rel (%p1495) target = $region96
        $region95: #{tpu_custom_call.1} parent=59 // pred_region
          %v1498 = vld [vmem:[#allocation3] sm:$0xff]
          %v1499 = vld [vmem:[#allocation3 + $0x8] sm:$0xff]
          %1500 = vadd.xlane.f32.xlu0 %v1498
          %v1501 = vpop.xlane.xlu0 %1500
          %1502 = vadd.xlane.f32.xlu0 %v1499
          %v1503 = vpop.xlane.xlu0 %1502
          %v1504 = vrcp.pop 128.0
          %v1505 = vmul.f32 %v1501, %v1504
          %v1506 = vmul.f32 %v1503, %v1504
          %v1507 = vsub.f32 %v1498, %v1505
          %v1508 = vsub.f32 %v1499, %v1506
          %v1509 = vmul.f32 %v1507, %v1507
          %v1510 = vmul.f32 %v1508, %v1508
          %1511 = vadd.xlane.f32.xlu0 %v1509
          %v1512 = vpop.xlane.xlu0 %1511
          %1513 = vadd.xlane.f32.xlu0 %v1510
          %v1514 = vpop.xlane.xlu0 %1513
          %v1515 = vmul.f32 %v1512, %v1504
          %v1516 = vmul.f32 %v1514, %v1504
          %v1517 = vadd.f32 %v1515, 1e-05
          %v1518 = vadd.f32 %v1516, 1e-05
          %v1519 = vrsqrt.pop %v1517
          %v1520 = vrsqrt.pop %v1518
          %v1521 = vmul.f32 %v1507, %v1519
          %v1522 = vmul.f32 %v1508, %v1520
          %v1523 = vlaneseq
          %v1524 = vshrl.u32 %v1523, 7
          %v1525 = vsub.s32 0, %v1524
          %v1526 = vrot.slane %v480, %v1525
          %v1527 = vmul.f32 %v1521, %v1526
          %v1528 = vmul.f32 %v1522, %v1526
          %v1529 = vlaneseq
          %v1530 = vshrl.u32 %v1529, 7
          %v1531 = vsub.s32 0, %v1530
          %v1532 = vrot.slane %v481, %v1531
          %v1533 = vadd.f32 %v1527, %v1532
          %v1534 = vadd.f32 %v1528, %v1532
          %v1535 = vpack.c.bf16 %v1534, %v1533
          %v1536 = vld [vmem:[#allocation14] sm:$0xff]
          %v1537 = vld [vmem:[#allocation14 + $0x8] sm:$0xff]
          %v1538 = vld [vmem:[#allocation14 + $0x10] sm:$0xff]
          %v1539 = vld [vmem:[#allocation14 + $0x18] sm:$0xff]
          %v1540 = vld [vmem:[#allocation14 + $0x20] sm:$0xff]
          %v1541 = vld [vmem:[#allocation14 + $0x28] sm:$0xff]
          %v1542 = vld [vmem:[#allocation14 + $0x30] sm:$0xff]
          %v1543 = vld [vmem:[#allocation14 + $0x38] sm:$0xff]
          %v1544 = vld [vmem:[#allocation14 + $0x40] sm:$0xff]
          %v1545 = vld [vmem:[#allocation14 + $0x48] sm:$0xff]
          %v1546 = vld [vmem:[#allocation14 + $0x50] sm:$0xff]
          %v1547 = vld [vmem:[#allocation14 + $0x58] sm:$0xff]
          %v1548 = vld [vmem:[#allocation14 + $0x60] sm:$0xff]
          %v1549 = vld [vmem:[#allocation14 + $0x68] sm:$0xff]
          %v1550 = vld [vmem:[#allocation14 + $0x70] sm:$0xff]
          %v1551 = vld [vmem:[#allocation14 + $0x78] sm:$0xff]
          %v1552 = vld [vmem:[%s7] sm:$0x3]
          %v1554 = vlaneseq
          %v1555 = vshrl.u32 %v1554, 7
          %v1556 = vsub.s32 0, %v1555
          %v1557 = vrot.slane %v1552, %v1556
          %v1558 = vlaneseq
          %v1559 = vshrl.u32 %v1558, 7
          %v1560 = vsub.s32 1, %v1559
          %v1561 = vrot.slane %v1552, %v1560
          %v1580 = vunpack.c.l.b16 %v1536
          %v1581 = vunpack.c.h.b16 %v1536
          %v1582 = vunpack.c.l.b16 %v1537
          %v1583 = vunpack.c.h.b16 %v1537
          %v1584 = vunpack.c.l.b16 %v1538
          %v1585 = vunpack.c.h.b16 %v1538
          %v1586 = vunpack.c.l.b16 %v1539
          %v1587 = vunpack.c.h.b16 %v1539
          %v1588 = vunpack.c.l.b16 %v1540
          %v1589 = vunpack.c.h.b16 %v1540
          %v1590 = vunpack.c.l.b16 %v1541
          %v1591 = vunpack.c.h.b16 %v1541
          %v1592 = vunpack.c.l.b16 %v1542
          %v1593 = vunpack.c.h.b16 %v1542
          %v1594 = vunpack.c.l.b16 %v1543
          %v1595 = vunpack.c.h.b16 %v1543
          %v1596 = vunpack.c.l.b16 %v1544
          %v1597 = vunpack.c.h.b16 %v1544
          %v1598 = vunpack.c.l.b16 %v1545
          %v1599 = vunpack.c.h.b16 %v1545
          %v1600 = vunpack.c.l.b16 %v1546
          %v1601 = vunpack.c.h.b16 %v1546
          %v1602 = vunpack.c.l.b16 %v1547
          %v1603 = vunpack.c.h.b16 %v1547
          %v1604 = vunpack.c.l.b16 %v1548
          %v1605 = vunpack.c.h.b16 %v1548
          %v1606 = vunpack.c.l.b16 %v1549
          %v1607 = vunpack.c.h.b16 %v1549
          %v1608 = vunpack.c.l.b16 %v1550
          %v1609 = vunpack.c.h.b16 %v1550
          %v1610 = vunpack.c.l.b16 %v1551
          %v1611 = vunpack.c.h.b16 %v1551
          %v1612 = vpack.c.b16 %v1582, %v1580
          %v1613 = vpack.c.b16 %v1583, %v1581
          %v1614 = vpack.c.b16 %v1586, %v1584
          %v1615 = vpack.c.b16 %v1587, %v1585
          %v1616 = vpack.c.b16 %v1590, %v1588
          %v1617 = vpack.c.b16 %v1591, %v1589
          %v1618 = vpack.c.b16 %v1594, %v1592
          %v1619 = vpack.c.b16 %v1595, %v1593
          %v1620 = vpack.c.b16 %v1598, %v1596
          %v1621 = vpack.c.b16 %v1599, %v1597
          %v1622 = vpack.c.b16 %v1602, %v1600
          %v1623 = vpack.c.b16 %v1603, %v1601
          %v1624 = vpack.c.b16 %v1606, %v1604
          %v1625 = vpack.c.b16 %v1607, %v1605
          %v1626 = vpack.c.b16 %v1610, %v1608
          %v1627 = vpack.c.b16 %v1611, %v1609
          %1644 = vmatprep.subr.bf16.mxu0 %v1613
          %1645 = vmatpush1.bf16.msra.mxu0 %v1612
          %1646 = vmatprep.subr.bf16.mxu0 %v1615
          %1647 = vmatpush1.bf16.msra.mxu0 %v1614
          %1648 = vmatprep.subr.bf16.mxu0 %v1617
          %1649 = vmatpush1.bf16.msra.mxu0 %v1616
          %1650 = vmatprep.subr.bf16.mxu0 %v1619
          %1651 = vmatpush1.bf16.msra.mxu0 %v1618
          %1652 = vmatprep.subr.bf16.mxu0 %v1621
          %1653 = vmatpush1.bf16.msra.mxu0 %v1620
          %1654 = vmatprep.subr.bf16.mxu0 %v1623
          %1655 = vmatpush1.bf16.msra.mxu0 %v1622
          %1656 = vmatprep.subr.bf16.mxu0 %v1625
          %1657 = vmatpush1.bf16.msra.mxu0 %v1624
          %1658 = vmatprep.subr.bf16.mxu0 %v1627
          %1659 = vmatpush1.bf16.msra.mxu0 %v1626
          %1660 = vmatprep.subr.bf16.mxu0 0
          %1661 = vmatpush1.bf16.msra.mxu0 0
          %1662 = vmatprep.subr.bf16.mxu0 0
          %1663 = vmatpush1.bf16.msra.mxu0 0
          %1664 = vmatprep.subr.bf16.mxu0 0
          %1665 = vmatpush1.bf16.msra.mxu0 0
          %1666 = vmatprep.subr.bf16.mxu0 0
          %1667 = vmatpush1.bf16.msra.mxu0 0
          %1668 = vmatprep.subr.bf16.mxu0 0
          %1669 = vmatpush1.bf16.msra.mxu0 0
          %1670 = vmatprep.subr.bf16.mxu0 0
          %1671 = vmatpush1.bf16.msra.mxu0 0
          %1672 = vmatprep.subr.bf16.mxu0 0
          %1673 = vmatpush1.bf16.msra.mxu0 0
          %1674 = vmatprep.subr.bf16.mxu0 0
          %1675 = vmatpush1.bf16.msra.mxu0 0
          %1676 = vmatprep.mubr.bf16.mxu0 0
          %1677 = vmatmul.mubr.bf16.gmra.mrb[0].mxu0 %v1535
          %v1678 = vpop.f32.mrb[0].mxu0
          %v1679 = vadd.f32 %v1557, %v1678
          %v1680 = vpop.f32.mrb[0].mxu0
          %v1681 = vadd.f32 %v1561, %v1680
          %v1682 = vpop.f32.mrb[0].mxu0
          %v1683 = vadd.f32 %v1557, %v1682
          %v1684 = vpop.f32.mrb[0].mxu0
          %v1685 = vadd.f32 %v1561, %v1684
          %1686 = vdwg.mxu0
          %v1687 = vmax.f32 %v1679, 0.0
          %v1688 = vmax.f32 %v1681, 0.0
          %v1689 = vmax.f32 %v1683, 0.0
          %v1690 = vmax.f32 %v1685, 0.0
          %v1691 = vpack.c.bf16 %v1689, %v1687
          %v1692 = vpack.c.bf16 %v1690, %v1688
          %v1693 = vld [vmem:[#allocation16] sm:$0xf]
          %v1694 = vld [vmem:[#allocation16 + $0x4] sm:$0xf]
          %v1695 = vld [vmem:[#allocation16 + $0x8] sm:$0xf]
          %v1696 = vld [vmem:[#allocation16 + $0xc] sm:$0xf]
          %v1697 = vld [vmem:[#allocation16 + $0x10] sm:$0xf]
          %v1698 = vld [vmem:[#allocation16 + $0x14] sm:$0xf]
          %v1699 = vld [vmem:[#allocation16 + $0x18] sm:$0xf]
          %v1700 = vld [vmem:[#allocation16 + $0x1c] sm:$0xf]
          %v1701 = vld [vmem:[#allocation16 + $0x20] sm:$0xf]
          %v1702 = vld [vmem:[#allocation16 + $0x24] sm:$0xf]
          %v1703 = vld [vmem:[#allocation16 + $0x28] sm:$0xf]
          %v1704 = vld [vmem:[#allocation16 + $0x2c] sm:$0xf]
          %v1705 = vld [vmem:[#allocation16 + $0x30] sm:$0xf]
          %v1706 = vld [vmem:[#allocation16 + $0x34] sm:$0xf]
          %v1707 = vld [vmem:[#allocation16 + $0x38] sm:$0xf]
          %v1708 = vld [vmem:[#allocation16 + $0x3c] sm:$0xf]
          %v1709 = vld [vmem:[#allocation16 + $0x40] sm:$0xf]
          %v1710 = vld [vmem:[#allocation16 + $0x44] sm:$0xf]
          %v1711 = vld [vmem:[#allocation16 + $0x48] sm:$0xf]
          %v1712 = vld [vmem:[#allocation16 + $0x4c] sm:$0xf]
          %v1713 = vld [vmem:[#allocation16 + $0x50] sm:$0xf]
          %v1714 = vld [vmem:[#allocation16 + $0x54] sm:$0xf]
          %v1715 = vld [vmem:[#allocation16 + $0x58] sm:$0xf]
          %v1716 = vld [vmem:[#allocation16 + $0x5c] sm:$0xf]
          %v1717 = vld [vmem:[#allocation16 + $0x60] sm:$0xf]
          %v1718 = vld [vmem:[#allocation16 + $0x64] sm:$0xf]
          %v1719 = vld [vmem:[#allocation16 + $0x68] sm:$0xf]
          %v1720 = vld [vmem:[#allocation16 + $0x6c] sm:$0xf]
          %v1721 = vld [vmem:[#allocation16 + $0x70] sm:$0xf]
          %v1722 = vld [vmem:[#allocation16 + $0x74] sm:$0xf]
          %v1723 = vld [vmem:[#allocation16 + $0x78] sm:$0xf]
          %v1724 = vld [vmem:[#allocation16 + $0x7c] sm:$0xf]
          %v1757 = vunpack.c.l.b16 %v1693
          %v1758 = vunpack.c.l.b16 %v1694
          %v1759 = vunpack.c.l.b16 %v1695
          %v1760 = vunpack.c.l.b16 %v1696
          %v1761 = vunpack.c.l.b16 %v1697
          %v1762 = vunpack.c.l.b16 %v1698
          %v1763 = vunpack.c.l.b16 %v1699
          %v1764 = vunpack.c.l.b16 %v1700
          %v1765 = vunpack.c.l.b16 %v1701
          %v1766 = vunpack.c.l.b16 %v1702
          %v1767 = vunpack.c.l.b16 %v1703
          %v1768 = vunpack.c.l.b16 %v1704
          %v1769 = vunpack.c.l.b16 %v1705
          %v1770 = vunpack.c.l.b16 %v1706
          %v1771 = vunpack.c.l.b16 %v1707
          %v1772 = vunpack.c.l.b16 %v1708
          %v1773 = vunpack.c.l.b16 %v1709
          %v1774 = vunpack.c.l.b16 %v1710
          %v1775 = vunpack.c.l.b16 %v1711
          %v1776 = vunpack.c.l.b16 %v1712
          %v1777 = vunpack.c.l.b16 %v1713
          %v1778 = vunpack.c.l.b16 %v1714
          %v1779 = vunpack.c.l.b16 %v1715
          %v1780 = vunpack.c.l.b16 %v1716
          %v1781 = vunpack.c.l.b16 %v1717
          %v1782 = vunpack.c.l.b16 %v1718
          %v1783 = vunpack.c.l.b16 %v1719
          %v1784 = vunpack.c.l.b16 %v1720
          %v1785 = vunpack.c.l.b16 %v1721
          %v1786 = vunpack.c.l.b16 %v1722
          %v1787 = vunpack.c.l.b16 %v1723
          %v1788 = vunpack.c.l.b16 %v1724
          %v1789 = vpack.c.b16 %v1758, %v1757
          %v1790 = vpack.c.b16 %v1760, %v1759
          %v1791 = vpack.c.b16 %v1762, %v1761
          %v1792 = vpack.c.b16 %v1764, %v1763
          %v1793 = vpack.c.b16 %v1766, %v1765
          %v1794 = vpack.c.b16 %v1768, %v1767
          %v1795 = vpack.c.b16 %v1770, %v1769
          %v1796 = vpack.c.b16 %v1772, %v1771
          %v1797 = vpack.c.b16 %v1774, %v1773
          %v1798 = vpack.c.b16 %v1776, %v1775
          %v1799 = vpack.c.b16 %v1778, %v1777
          %v1800 = vpack.c.b16 %v1780, %v1779
          %v1801 = vpack.c.b16 %v1782, %v1781
          %v1802 = vpack.c.b16 %v1784, %v1783
          %v1803 = vpack.c.b16 %v1786, %v1785
          %v1804 = vpack.c.b16 %v1788, %v1787
          %1821 = vmatprep.subr.bf16.mxu0 0
          %1822 = vmatpush1.bf16.msra.mxu0 %v1789
          %1823 = vmatprep.subr.bf16.mxu0 0
          %1824 = vmatpush1.bf16.msra.mxu0 %v1790
          %1825 = vmatprep.subr.bf16.mxu0 0
          %1826 = vmatpush1.bf16.msra.mxu0 %v1791
          %1827 = vmatprep.subr.bf16.mxu0 0
          %1828 = vmatpush1.bf16.msra.mxu0 %v1792
          %1829 = vmatprep.subr.bf16.mxu0 0
          %1830 = vmatpush1.bf16.msra.mxu0 %v1793
          %1831 = vmatprep.subr.bf16.mxu0 0
          %1832 = vmatpush1.bf16.msra.mxu0 %v1794
          %1833 = vmatprep.subr.bf16.mxu0 0
          %1834 = vmatpush1.bf16.msra.mxu0 %v1795
          %1835 = vmatprep.subr.bf16.mxu0 0
          %1836 = vmatpush1.bf16.msra.mxu0 %v1796
          %1837 = vmatprep.subr.bf16.mxu0 0
          %1838 = vmatpush1.bf16.msra.mxu0 %v1797
          %1839 = vmatprep.subr.bf16.mxu0 0
          %1840 = vmatpush1.bf16.msra.mxu0 %v1798
          %1841 = vmatprep.subr.bf16.mxu0 0
          %1842 = vmatpush1.bf16.msra.mxu0 %v1799
          %1843 = vmatprep.subr.bf16.mxu0 0
          %1844 = vmatpush1.bf16.msra.mxu0 %v1800
          %1845 = vmatprep.subr.bf16.mxu0 0
          %1846 = vmatpush1.bf16.msra.mxu0 %v1801
          %1847 = vmatprep.subr.bf16.mxu0 0
          %1848 = vmatpush1.bf16.msra.mxu0 %v1802
          %1849 = vmatprep.subr.bf16.mxu0 0
          %1850 = vmatpush1.bf16.msra.mxu0 %v1803
          %1851 = vmatprep.subr.bf16.mxu0 0
          %1852 = vmatpush1.bf16.msra.mxu0 %v1804
          %1853 = vmatprep.mubr.bf16.mxu0 %v1692
          %1854 = vmatmul.mubr.bf16.gmra.mrb[0].mxu0 %v1691
          %v1855 = vpop.f32.mrb[0].mxu0
          %v1856 = vadd.f32 0.0, %v1855
          %v1857 = vpop.f32.mrb[0].mxu0
          %v1858 = vpop.f32.mrb[0].mxu0
          %v1859 = vadd.f32 0.0, %v1858
          %v1860 = vpop.f32.mrb[0].mxu0
          %1861 = vdwg.mxu0
          %v1862 = vadd.f32 %v1498, %v1856
          %v1863 = vadd.f32 %v1499, %v1859
          %v1864 = vlaneseq
          %v1865 = vshrl.u32 %v1864, 7
          %v1866 = vsub.s32 0, %v1865
          %v1867 = vrot.slane %v483, %v1866
          %v1868 = vadd.f32 %v1862, %v1867
          %v1869 = vadd.f32 %v1863, %v1867
          %1870 = vst [vmem:[%s476] sm:$0xff] %v1868
          %1871 = vst [vmem:[%s476 + $0x8] sm:$0xff] %v1869
        $region96: #{tpu_custom_call.1} parent=59 // pred_fallthru
          _
        %s1872 = sand.u32 %s265, 1
        %s1873 = scalar_lea.sflag [#allocation7], %s1872
        %s1874 = sand.u32 %s265, 1
        %s1875 = smul.addr %s1874, 16
        %s1876 = scalar_lea.vmem [#allocation17], %s1875
        // Predicated region
        $region97: #{tpu_custom_call.1} parent=59 // pred_check
          %p1877 = pneg %p275
        $region98: #{tpu_custom_call.1} parent=59 // pred_check_branch
          %1879 = sbr.rel (%p1877) target = $region100
        $region99: #{tpu_custom_call.1} parent=59 // pred_region
          %s1881 = ssub.s32 256, 256
          %1882 = vsyncadd %s1873, %s1881
          %s1883 = smul.addr %s34, 2
          %s1884 = smul.addr %s1883, 128
          %s1885 = scalar_lea.hbm %s10, %s1884
          %s1886 = sshll.u32 %s1876, 4
          %s1887 = int_to_ptr.vmem [resolvable:$true] %s1886
          %1892 = dma.vmem_to_hbm [thread:$0]  %s1887, 256, %s1885, %s1873, 128, 128, 8
        $region100: #{tpu_custom_call.1} parent=59 // pred_fallthru
          _
      $region60: #{tpu_custom_call.1} parent=5 // pred_fallthru
        _
      %p1893 = scmp.le.s32.totalorder 2, %s25
      // Predicated region
      $region101: #{tpu_custom_call.1} parent=5 // pred_check
        %p1894 = pneg %p1893
      $region102: #{tpu_custom_call.1} parent=5 // pred_check_branch
        %1896 = sbr.rel (%p1894) target = $region104
      $region103: #{tpu_custom_call.1} parent=5 // pred_region
        %s1897 = ssub.s32 %s25, 2
        // Predicated region
        $region105: #{tpu_custom_call.1} parent=103 // pred_check
          %p1898 = pneg %p281
        $region106: #{tpu_custom_call.1} parent=103 // pred_check_branch
          %1900 = sbr.rel (%p1898) target = $region108
        $region107: #{tpu_custom_call.1} parent=103 // pred_region
          %s1901 = sand.u32 %s266, 1
          %s1902 = scalar_lea.sflag [#allocation7], %s1901
          %s1903 = sand.u32 %s266, 1
          %s1904 = smul.addr %s1903, 16
          %s1905 = scalar_lea.vmem [#allocation17], %s1904
          %1906 = dma.done %s1902, 256
        $region108: #{tpu_custom_call.1} parent=103 // pred_fallthru
          _
      $region104: #{tpu_custom_call.1} parent=5 // pred_fallthru
        _
    $region6: #{tpu_custom_call.1} parent=1 // loop_footer
      %s29 = sadd.s32 1, %s25
    $region7: #{tpu_custom_call.1} parent=1 // loop_footer_branch
      %24 = sbr.rel target = $region3
    $region8: #{tpu_custom_call.1} parent=1 // loop_exit
      _
    %1907 = vsyncpa [#allocation6], 1
    %s1908 = scalar_lea.sflag [#allocation6], 1
    %1909 = vsyncpa %s1908, 1
    %1910 = vsyncpa [#allocation9], 1
    %1911 = vsyncpa [#allocation12], 1
    %1912 = vsyncpa [#allocation15], 1
    %1913 = vsyncpa [#allocation7], 1
    %s1914 = scalar_lea.sflag [#allocation7], 1
    %1915 = vsyncpa %s1914, 1

</llo_original>
